<compile_context>
chip_gen: v5e
topology: v5e:2x2
jax: 0.10.0
libtpu: 0.0.40
codegen_flags: <defaults>
</compile_context>

<pallas_src>
import jax
import jax.numpy as jnp
import numpy as np
from jax.experimental import pallas as pl
from jax.experimental.pallas import tpu as pltpu


def sensory_update_kernel(x_ref, w_ref, b_ref, o_ref, col_ref):
    # x_ref  : (TB, H, W, Cin)    bf16  NHWC conv input (g ++ h channels), UNPADDED
    # w_ref  : (9*Cin, 3*dim)     bf16  im2col-ordered fused-gate conv weight
    # b_ref  : (1, 3*dim)         f32   fused-gate conv bias
    # o_ref  : (TB, dim, H*W)     f32   new hidden state, NCHW-compatible slab
    # col_ref: (TB, H, W, 9*Cin)  bf16  im2col scratch (VMEM)
    TB, H, W, Cin = x_ref.shape
    dim = o_ref.shape[1]
    f_dim = Cin - dim
    M = TB * H * W

    # Border lanes of the im2col scratch stay zero == the conv's zero padding.
    # Zeroed every grid step (scratch is per-core; a program_id==0 guard would
    # be wrong under v7x megacore partitioning of the parallel grid axis).
    col_ref[...] = jnp.zeros_like(col_ref)

    # 9 shifted copies build the im2col LHS. Each is a plain 4-D window copy
    # (no reshape on either side), restricted to the in-bounds output rows /
    # cols of its tap; everything else keeps the padding zeros.
    for dy in range(3):
        for dx in range(3):
            tap = dy * 3 + dx
            y0, y1 = max(0, 1 - dy), min(H, H + 1 - dy)
            x0, x1 = max(0, 1 - dx), min(W, W + 1 - dx)
            col_ref[:, y0:y1, x0:x1, tap * Cin:(tap + 1) * Cin] = (
                x_ref[:, y0 + dy - 1:y1 + dy - 1, x0 + dx - 1:x1 + dx - 1, :])

    # Single fused-gate matmul per grid step: K = 9*Cin (288 at test dims)
    # fills the MXU contraction width; one f32 accumulator update total.
    col = col_ref[...].reshape(M, 9 * Cin)        # layout-friendly: W % 8 == 0
    acc = jnp.dot(col, w_ref[...], preferred_element_type=jnp.float32)
    acc = acc + b_ref[...]                        # hoisted bias broadcast

    # One EUP pass for both sigmoids.
    gates = jax.nn.sigmoid(acc[:, :2 * dim])
    forget_gate = gates[:, :dim]
    update_gate = gates[:, dim:]
    new_value = jnp.tanh(acc[:, 2 * dim:])

    # Current hidden state = h channels of the centre tap (already in VMEM).
    # Deliberate precision choice: h passed through bf16 like the conv
    # operands; gate math and the recurrence stay f32 (tolerance ~5e-2).
    h_cur = col[:, 4 * Cin + f_dim:5 * Cin].astype(jnp.float32)
    new_h = forget_gate * h_cur * (1.0 - update_gate) + update_gate * new_value

    # Emit an NCHW-compatible slab in-kernel: (M, dim) -> (TB, H*W, dim)
    # -> (TB, dim, H*W), so the wrapper needs no output transpose.
    o_ref[...] = jnp.transpose(new_h.reshape(TB, H * W, dim), (0, 2, 1))


def _pick_tb(BN, H, W, Cin, dim, budget_bytes=24 * 1024 * 1024, max_tb=8):
    """Images per grid step, bounded by a per-step VMEM budget."""
    def step_bytes(tb):
        x_tile = 2 * tb * H * W * Cin * 2              # bf16 input, double-buffered
        out_tile = 2 * tb * dim * H * W * 4            # f32 output, double-buffered
        col = tb * H * W * 9 * Cin * 2                 # bf16 im2col scratch (single)
        wgt = 2 * (9 * Cin * 3 * dim * 2 + 3 * dim * 4)  # weights+bias (dbl-buffered)
        return x_tile + out_tile + col + wgt

    fits = [d for d in range(1, min(BN, max_tb) + 1)
            if BN % d == 0 and step_bytes(d) <= budget_bytes]
    if not fits:
        return 1
    # Prefer the largest TB that still leaves an even grid >= 2 (keeps both
    # v7x TensorCores evenly busy); otherwise take the largest fitting TB
    # (single-TC v5e/v6e prefer fewer, fatter steps). Prime/awkward BN falls
    # back to a divisor (correct, just more grid steps).
    even = [d for d in fits if (BN // d) >= 2 and (BN // d) % 2 == 0]
    return max(even) if even else max(fits)


def sensory_deep_updater(g, h, weight, bias):
    """g: (B, N, f_dim, H, W), h: (B, N, sensory_dim, H, W)
       weight: (3*sensory_dim, f_dim+sensory_dim, 3, 3)  (PyTorch OIHW)
       bias:   (3*sensory_dim,)
       returns new_h: (B, N, sensory_dim, H, W)"""
    B, N, f_dim, H, W = g.shape
    dim = h.shape[2]
    BN = B * N
    Cin = f_dim + dim

    # --- wrapper glue: bf16 FIRST, then NCHW -> NHWC, then channel concat. ---
    # No zero-pad pass here: the conv halo is handled in-kernel.
    g_nhwc = jnp.transpose(
        g.reshape(BN, f_dim, H, W).astype(jnp.bfloat16), (0, 2, 3, 1))
    h_nhwc = jnp.transpose(
        h.reshape(BN, dim, H, W).astype(jnp.bfloat16), (0, 2, 3, 1))
    x = jnp.concatenate([g_nhwc, h_nhwc], axis=-1)       # (BN, H, W, Cin)

    # im2col-ordered fused-gate weight: OIHW -> (ky, kx, in, out) -> (9*Cin, 3*dim)
    # Row index = (ky*3 + kx)*Cin + in_channel, matching the scratch layout.
    w = jnp.transpose(weight.astype(jnp.float32), (2, 3, 1, 0))
    w = w.reshape(9 * Cin, 3 * dim).astype(jnp.bfloat16)
    b = bias.reshape(1, 3 * dim).astype(jnp.float32)

    TB = _pick_tb(BN, H, W, Cin, dim)
    grid = (BN // TB,)

    out = pl.pallas_call(
        sensory_update_kernel,
        out_shape=jax.ShapeDtypeStruct((BN, dim, H * W), jnp.float32),
        grid_spec=pltpu.PrefetchScalarGridSpec(
            num_scalar_prefetch=0,
            grid=grid,
            in_specs=[
                pl.BlockSpec((TB, H, W, Cin), lambda i: (i, 0, 0, 0)),
                # Grid-invariant weights/bias. (Could be single-buffered via
                # pipeline_mode=pl.Buffered(1) when they grow to ~10 MB at
                # production Cutie dims; negligible at these shapes.)
                pl.BlockSpec((9 * Cin, 3 * dim), lambda i: (0, 0)),
                pl.BlockSpec((1, 3 * dim), lambda i: (0, 0)),
            ],
            out_specs=pl.BlockSpec((TB, dim, H * W), lambda i: (i, 0, 0)),
            scratch_shapes=[pltpu.VMEM((TB, H, W, 9 * Cin), jnp.bfloat16)],
        ),
        compiler_params=pltpu.CompilerParams(
            dimension_semantics=("parallel",),
            # Above v5e's 16 MiB scoped default, below v7x's 64 MiB physical;
            # _pick_tb keeps the per-step footprint under 24 MiB.
            vmem_limit_bytes=32 * 1024 * 1024,
        ),
    )(x, w, b)

    # (BN, dim, H*W) -> (B, N, dim, H, W): contiguous reshape, no transpose.
    return out.reshape(B, N, dim, H, W)


def reference(g, h, weight, bias):
    """Pure-JAX f32 replica of the PyTorch forward (for validation)."""
    B, N, f_dim, H, W = g.shape
    dim = h.shape[2]
    x = jnp.concatenate([g, h], axis=2).reshape(B * N, f_dim + dim, H, W)
    y = jax.lax.conv_general_dilated(
        x.astype(jnp.float32), weight.astype(jnp.float32),
        window_strides=(1, 1), padding=((1, 1), (1, 1)),
        dimension_numbers=("NCHW", "OIHW", "NCHW"))
    y = y + bias[None, :, None, None]
    f = jax.nn.sigmoid(y[:, :dim])
    u = jax.nn.sigmoid(y[:, dim:2 * dim])
    n = jnp.tanh(y[:, 2 * dim:])
    hf = h.reshape(B * N, dim, H, W).astype(jnp.float32)
    new_h = f * hf * (1.0 - u) + u * n
    return new_h.reshape(B, N, dim, H, W)


if __name__ == "__main__":
    B, N = 2, 2
    f_dim, sensory_dim = 16, 16
    H, W = 8, 8
    Cin, Cout = f_dim + sensory_dim, 3 * sensory_dim

    key = jax.random.PRNGKey(0)
    kg, kh, kw, kb = jax.random.split(key, 4)

    g = jax.random.normal(kg, (B, N, f_dim, H, W), dtype=jnp.float32)
    h = jax.random.normal(kh, (B, N, sensory_dim, H, W), dtype=jnp.float32)

    # Conv weight init: xavier_normal_ on (Cout, Cin, 3, 3)
    fan_in, fan_out = Cin * 9, Cout * 9
    std = float(np.sqrt(2.0 / (fan_in + fan_out)))
    weight = std * jax.random.normal(kw, (Cout, Cin, 3, 3), dtype=jnp.float32)
    # PyTorch Conv2d default bias init: U(-1/sqrt(fan_in), 1/sqrt(fan_in))
    bound = 1.0 / float(np.sqrt(fan_in))
    bias = jax.random.uniform(kb, (Cout,), minval=-bound, maxval=bound,
                              dtype=jnp.float32)

    out = sensory_deep_updater(g, h, weight, bias)
    out = jax.block_until_ready(out)

    ref = jax.block_until_ready(reference(g, h, weight, bias))
    # Tolerance loosened for the deliberate bf16 activation/weight cast
    # (f32 accumulation and gate math).
    np.testing.assert_allclose(np.asarray(out), np.asarray(ref),
                               rtol=5e-2, atol=5e-2)
    print("KERNEL_OK")
</pallas_src>

<mosaic_0001>
module attributes {stable_mosaic.version = 11 : i64} {
  func.func @sensory_update_kernel(%arg0: i32, %arg1: memref<2x8x8x32xbf16, #tpu.memory_space<vmem>>, %arg2: memref<288x48xbf16, #tpu.memory_space<vmem>>, %arg3: memref<1x48xf32, #tpu.memory_space<vmem>>, %arg4: memref<2x16x64xf32, #tpu.memory_space<vmem>>, %arg5: memref<2x8x8x288xbf16, #tpu.memory_space<vmem>>) attributes {dimension_semantics = [#tpu.dimension_semantics<parallel>], iteration_bounds = array<i64: 2>, scalar_prefetch = 0 : i64, scratch_operands = 1 : i64, tpu.core_type = #tpu.core_type<tc>, window_params = [{transform_indices = @transform_0, window_bounds = array<i64: 2, 8, 8, 32>}, {pipeline_mode = #tpu.pipeline_mode<synchronous>, transform_indices = @transform_1, window_bounds = array<i64: 288, 48>}, {pipeline_mode = #tpu.pipeline_mode<synchronous>, transform_indices = @transform_2, window_bounds = array<i64: 1, 48>}, {transform_indices = @transform_3, window_bounds = array<i64: 2, 16, 64>}]} {
    %cst = arith.constant 0.000000e+00 : bf16
    %0 = vector.broadcast %cst : bf16 to vector<2x8x8x288xbf16>
    %c0 = arith.constant 0 : index
    %c0_0 = arith.constant 0 : index
    %c0_1 = arith.constant 0 : index
    %c0_2 = arith.constant 0 : index
    %1 = vector.load %arg5[%c0, %c0_0, %c0_1, %c0_2] : memref<2x8x8x288xbf16, #tpu.memory_space<vmem>>, vector<2x8x8x288xbf16>
    tpu.vector_store %arg5[%c0, %c0_0, %c0_1, %c0_2], %0 {strides = array<i32>} : memref<2x8x8x288xbf16, #tpu.memory_space<vmem>>, vector<2x8x8x288xbf16>,
    %c0_3 = arith.constant 0 : index
    %c0_4 = arith.constant 0 : index
    %c0_5 = arith.constant 0 : index
    %c0_6 = arith.constant 0 : index
    %2 = vector.load %arg1[%c0_3, %c0_4, %c0_5, %c0_6] : memref<2x8x8x32xbf16, #tpu.memory_space<vmem>>, vector<2x7x7x32xbf16>
    %c0_7 = arith.constant 0 : index
    %c1 = arith.constant 1 : index
    %c1_8 = arith.constant 1 : index
    %c0_9 = arith.constant 0 : index
    %3 = vector.load %arg5[%c0_7, %c1, %c1_8, %c0_9] : memref<2x8x8x288xbf16, #tpu.memory_space<vmem>>, vector<2x7x7x32xbf16>
    tpu.vector_store %arg5[%c0_7, %c1, %c1_8, %c0_9], %2 {strides = array<i32>} : memref<2x8x8x288xbf16, #tpu.memory_space<vmem>>, vector<2x7x7x32xbf16>,
    %c0_10 = arith.constant 0 : index
    %c0_11 = arith.constant 0 : index
    %c0_12 = arith.constant 0 : index
    %c0_13 = arith.constant 0 : index
    %4 = vector.load %arg1[%c0_10, %c0_11, %c0_12, %c0_13] : memref<2x8x8x32xbf16, #tpu.memory_space<vmem>>, vector<2x7x8x32xbf16>
    %c0_14 = arith.constant 0 : index
    %c1_15 = arith.constant 1 : index
    %c0_16 = arith.constant 0 : index
    %c32 = arith.constant 32 : index
    %5 = vector.load %arg5[%c0_14, %c1_15, %c0_16, %c32] : memref<2x8x8x288xbf16, #tpu.memory_space<vmem>>, vector<2x7x8x32xbf16>
    tpu.vector_store %arg5[%c0_14, %c1_15, %c0_16, %c32], %4 {strides = array<i32>} : memref<2x8x8x288xbf16, #tpu.memory_space<vmem>>, vector<2x7x8x32xbf16>,
    %c0_17 = arith.constant 0 : index
    %c0_18 = arith.constant 0 : index
    %c1_19 = arith.constant 1 : index
    %c0_20 = arith.constant 0 : index
    %6 = vector.load %arg1[%c0_17, %c0_18, %c1_19, %c0_20] : memref<2x8x8x32xbf16, #tpu.memory_space<vmem>>, vector<2x7x7x32xbf16>
    %c0_21 = arith.constant 0 : index
    %c1_22 = arith.constant 1 : index
    %c0_23 = arith.constant 0 : index
    %c64 = arith.constant 64 : index
    %7 = vector.load %arg5[%c0_21, %c1_22, %c0_23, %c64] : memref<2x8x8x288xbf16, #tpu.memory_space<vmem>>, vector<2x7x7x32xbf16>
    tpu.vector_store %arg5[%c0_21, %c1_22, %c0_23, %c64], %6 {strides = array<i32>} : memref<2x8x8x288xbf16, #tpu.memory_space<vmem>>, vector<2x7x7x32xbf16>,
    %c0_24 = arith.constant 0 : index
    %c0_25 = arith.constant 0 : index
    %c0_26 = arith.constant 0 : index
    %c0_27 = arith.constant 0 : index
    %8 = vector.load %arg1[%c0_24, %c0_25, %c0_26, %c0_27] : memref<2x8x8x32xbf16, #tpu.memory_space<vmem>>, vector<2x8x7x32xbf16>
    %c0_28 = arith.constant 0 : index
    %c0_29 = arith.constant 0 : index
    %c1_30 = arith.constant 1 : index
    %c96 = arith.constant 96 : index
    %9 = vector.load %arg5[%c0_28, %c0_29, %c1_30, %c96] : memref<2x8x8x288xbf16, #tpu.memory_space<vmem>>, vector<2x8x7x32xbf16>
    tpu.vector_store %arg5[%c0_28, %c0_29, %c1_30, %c96], %8 {strides = array<i32>} : memref<2x8x8x288xbf16, #tpu.memory_space<vmem>>, vector<2x8x7x32xbf16>,
    %c0_31 = arith.constant 0 : index
    %c0_32 = arith.constant 0 : index
    %c0_33 = arith.constant 0 : index
    %c0_34 = arith.constant 0 : index
    %10 = vector.load %arg1[%c0_31, %c0_32, %c0_33, %c0_34] : memref<2x8x8x32xbf16, #tpu.memory_space<vmem>>, vector<2x8x8x32xbf16>
    %c0_35 = arith.constant 0 : index
    %c0_36 = arith.constant 0 : index
    %c0_37 = arith.constant 0 : index
    %c128 = arith.constant 128 : index
    %11 = vector.load %arg5[%c0_35, %c0_36, %c0_37, %c128] : memref<2x8x8x288xbf16, #tpu.memory_space<vmem>>, vector<2x8x8x32xbf16>
    tpu.vector_store %arg5[%c0_35, %c0_36, %c0_37, %c128], %10 {strides = array<i32>} : memref<2x8x8x288xbf16, #tpu.memory_space<vmem>>, vector<2x8x8x32xbf16>,
    %c0_38 = arith.constant 0 : index
    %c0_39 = arith.constant 0 : index
    %c1_40 = arith.constant 1 : index
    %c0_41 = arith.constant 0 : index
    %12 = vector.load %arg1[%c0_38, %c0_39, %c1_40, %c0_41] : memref<2x8x8x32xbf16, #tpu.memory_space<vmem>>, vector<2x8x7x32xbf16>
    %c0_42 = arith.constant 0 : index
    %c0_43 = arith.constant 0 : index
    %c0_44 = arith.constant 0 : index
    %c160 = arith.constant 160 : index
    %13 = vector.load %arg5[%c0_42, %c0_43, %c0_44, %c160] : memref<2x8x8x288xbf16, #tpu.memory_space<vmem>>, vector<2x8x7x32xbf16>
    tpu.vector_store %arg5[%c0_42, %c0_43, %c0_44, %c160], %12 {strides = array<i32>} : memref<2x8x8x288xbf16, #tpu.memory_space<vmem>>, vector<2x8x7x32xbf16>,
    %c0_45 = arith.constant 0 : index
    %c1_46 = arith.constant 1 : index
    %c0_47 = arith.constant 0 : index
    %c0_48 = arith.constant 0 : index
    %14 = vector.load %arg1[%c0_45, %c1_46, %c0_47, %c0_48] : memref<2x8x8x32xbf16, #tpu.memory_space<vmem>>, vector<2x7x7x32xbf16>
    %c0_49 = arith.constant 0 : index
    %c0_50 = arith.constant 0 : index
    %c1_51 = arith.constant 1 : index
    %c192 = arith.constant 192 : index
    %15 = vector.load %arg5[%c0_49, %c0_50, %c1_51, %c192] : memref<2x8x8x288xbf16, #tpu.memory_space<vmem>>, vector<2x7x7x32xbf16>
    tpu.vector_store %arg5[%c0_49, %c0_50, %c1_51, %c192], %14 {strides = array<i32>} : memref<2x8x8x288xbf16, #tpu.memory_space<vmem>>, vector<2x7x7x32xbf16>,
    %c0_52 = arith.constant 0 : index
    %c1_53 = arith.constant 1 : index
    %c0_54 = arith.constant 0 : index
    %c0_55 = arith.constant 0 : index
    %16 = vector.load %arg1[%c0_52, %c1_53, %c0_54, %c0_55] : memref<2x8x8x32xbf16, #tpu.memory_space<vmem>>, vector<2x7x8x32xbf16>
    %c0_56 = arith.constant 0 : index
    %c0_57 = arith.constant 0 : index
    %c0_58 = arith.constant 0 : index
    %c224 = arith.constant 224 : index
    %17 = vector.load %arg5[%c0_56, %c0_57, %c0_58, %c224] : memref<2x8x8x288xbf16, #tpu.memory_space<vmem>>, vector<2x7x8x32xbf16>
    tpu.vector_store %arg5[%c0_56, %c0_57, %c0_58, %c224], %16 {strides = array<i32>} : memref<2x8x8x288xbf16, #tpu.memory_space<vmem>>, vector<2x7x8x32xbf16>,
    %c0_59 = arith.constant 0 : index
    %c1_60 = arith.constant 1 : index
    %c1_61 = arith.constant 1 : index
    %c0_62 = arith.constant 0 : index
    %18 = vector.load %arg1[%c0_59, %c1_60, %c1_61, %c0_62] : memref<2x8x8x32xbf16, #tpu.memory_space<vmem>>, vector<2x7x7x32xbf16>
    %c0_63 = arith.constant 0 : index
    %c0_64 = arith.constant 0 : index
    %c0_65 = arith.constant 0 : index
    %c256 = arith.constant 256 : index
    %19 = vector.load %arg5[%c0_63, %c0_64, %c0_65, %c256] : memref<2x8x8x288xbf16, #tpu.memory_space<vmem>>, vector<2x7x7x32xbf16>
    tpu.vector_store %arg5[%c0_63, %c0_64, %c0_65, %c256], %18 {strides = array<i32>} : memref<2x8x8x288xbf16, #tpu.memory_space<vmem>>, vector<2x7x7x32xbf16>,
    %c0_66 = arith.constant 0 : index
    %c0_67 = arith.constant 0 : index
    %c0_68 = arith.constant 0 : index
    %c0_69 = arith.constant 0 : index
    %20 = vector.load %arg5[%c0_66, %c0_67, %c0_68, %c0_69] : memref<2x8x8x288xbf16, #tpu.memory_space<vmem>>, vector<2x8x8x288xbf16>
    %21 = vector.shape_cast %20 : vector<2x8x8x288xbf16> to vector<128x288xbf16>
    %c0_70 = arith.constant 0 : index
    %c0_71 = arith.constant 0 : index
    %22 = vector.load %arg2[%c0_70, %c0_71] : memref<288x48xbf16, #tpu.memory_space<vmem>>, vector<288x48xbf16>
    %cst_72 = arith.constant dense<0.000000e+00> : vector<128x48xf32>
    %23 = tpu.matmul %21, %22, %cst_72 {dimension_numbers = #tpu.dot_dimension_numbers<[1], [0], [0], [1], [0, 0, 1, 1], [], []>} : vector<128x288xbf16>, vector<288x48xbf16>, vector<128x48xf32> -> vector<128x48xf32>
    %c0_73 = arith.constant 0 : index
    %c0_74 = arith.constant 0 : index
    %24 = vector.load %arg3[%c0_73, %c0_74] : memref<1x48xf32, #tpu.memory_space<vmem>>, vector<1x48xf32>
    %25 = vector.broadcast %24 : vector<1x48xf32> to vector<128x48xf32>
    %26 = arith.addf %23, %25 : vector<128x48xf32>
    %27 = vector.extract_strided_slice %26 {offsets = [0, 0], sizes = [128, 32], strides = [1, 1]} : vector<128x48xf32> to vector<128x32xf32>
    %28 = arith.negf %27 : vector<128x32xf32>
    %29 = math.exp %28 : vector<128x32xf32>
    %cst_75 = arith.constant 1.000000e+00 : f32
    %30 = vector.broadcast %cst_75 : f32 to vector<128x32xf32>
    %31 = arith.addf %30, %29 : vector<128x32xf32>
    %32 = arith.divf %30, %31 : vector<128x32xf32>
    %33 = vector.extract_strided_slice %32 {offsets = [0, 0], sizes = [128, 16], strides = [1, 1]} : vector<128x32xf32> to vector<128x16xf32>
    %34 = vector.extract_strided_slice %32 {offsets = [0, 16], sizes = [128, 16], strides = [1, 1]} : vector<128x32xf32> to vector<128x16xf32>
    %35 = vector.extract_strided_slice %26 {offsets = [0, 32], sizes = [128, 16], strides = [1, 1]} : vector<128x48xf32> to vector<128x16xf32>
    %36 = math.tanh %35 : vector<128x16xf32>
    %37 = vector.extract_strided_slice %21 {offsets = [0, 144], sizes = [128, 16], strides = [1, 1]} : vector<128x288xbf16> to vector<128x16xbf16>
    %38 = arith.extf %37 : vector<128x16xbf16> to vector<128x16xf32>
    %39 = arith.mulf %33, %38 : vector<128x16xf32>
    %cst_76 = arith.constant 1.000000e+00 : f32
    %40 = vector.broadcast %cst_76 : f32 to vector<128x16xf32>
    %41 = arith.subf %40, %34 : vector<128x16xf32>
    %42 = arith.mulf %39, %41 : vector<128x16xf32>
    %43 = arith.mulf %34, %36 : vector<128x16xf32>
    %44 = arith.addf %42, %43 : vector<128x16xf32>
    %45 = vector.shape_cast %44 : vector<128x16xf32> to vector<2x64x16xf32>
    %46 = tpu.transpose %45, [0, 2, 1] : vector<2x64x16xf32> -> vector<2x16x64xf32>
    %c0_77 = arith.constant 0 : index
    %c0_78 = arith.constant 0 : index
    %c0_79 = arith.constant 0 : index
    %47 = vector.load %arg4[%c0_77, %c0_78, %c0_79] : memref<2x16x64xf32, #tpu.memory_space<vmem>>, vector<2x16x64xf32>
    tpu.vector_store %arg4[%c0_77, %c0_78, %c0_79], %46 {strides = array<i32>} : memref<2x16x64xf32, #tpu.memory_space<vmem>>, vector<2x16x64xf32>,
    return
  }
  func.func @transform_0(%arg0: i32) -> (i32, i32, i32, i32) {
    %c0_i32 = arith.constant 0 : i32
    %c0_i32_0 = arith.constant 0 : i32
    %c0_i32_1 = arith.constant 0 : i32
    %c0_i32_2 = arith.constant 0 : i32
    return %arg0, %c0_i32, %c0_i32_0, %c0_i32_1 : i32, i32, i32, i32
  }
  func.func @transform_1(%arg0: i32) -> (i32, i32) {
    %c0_i32 = arith.constant 0 : i32
    %c0_i32_0 = arith.constant 0 : i32
    %c0_i32_1 = arith.constant 0 : i32
    return %c0_i32, %c0_i32_0 : i32, i32
  }
  func.func @transform_2(%arg0: i32) -> (i32, i32) {
    %c0_i32 = arith.constant 0 : i32
    %c0_i32_0 = arith.constant 0 : i32
    %c0_i32_1 = arith.constant 0 : i32
    return %c0_i32, %c0_i32_0 : i32, i32
  }
  func.func @transform_3(%arg0: i32) -> (i32, i32, i32) {
    %c0_i32 = arith.constant 0 : i32
    %c0_i32_0 = arith.constant 0 : i32
    %c0_i32_1 = arith.constant 0 : i32
    return %arg0, %c0_i32, %c0_i32_0 : i32, i32, i32
  }
}

</mosaic_0001>

<llo_original>
// kernel: tpu_custom_call.1
$region0: #{tpu_custom_call.1}
  #allocation0 [shape = 'u32[]', space=smem, size = 0x4, offset = 0x4, fixed_abs, tag = 'smem constant byte address 0x4 - core index']
  #allocation1 [shape = 'u32[72,128]{1,0:T(1,128)}', space=vmem, size = 0x9000, scoped, tag = 'internal scratch']
  #allocation2 [shape = 'bf16[2,8,8,288]{3,2,1,0:T(8,128)(2,1)}', space=vmem, size = 0x18000, scoped, tag = 'scratch operand']
  %s0 = inlined_call_operand.vmem [shape: bf16[4,8,8,32], index: 0, kind: input, shape index: {}]
  %s1 = inlined_call_operand.vmem [shape: bf16[288,48], index: 1, kind: input, shape index: {}]
  %s2 = inlined_call_operand.vmem [shape: f32[1,48], index: 2, kind: input, shape index: {}]
  %s3 = inlined_call_operand.hbm [shape: f32[4,16,64], index: 3, kind: output, shape index: {}]
  %s4 = sld [smem:[#allocation0]]
  $region45: #{tpu_custom_call.1} parent=0
    _
  %s6 = ssub.s32 1, %s4
  %s7 = scalar_select 0, %s6, %s4
  $region1: #{tpu_custom_call.1} parent=0
    #allocation3 [shape = 'u8[32768]{0}', space=vmem, size = 0x8000, scoped, tag = 'output window, operand 0']
    #allocation4 [shape = 's32[2]{0}', space=sflag, size = 0x8, scoped, tag = 'scoped memory for tpu_custom_call.1']
    %8 = vsyncpa [#allocation4], 0
    %s9 = scalar_lea.sflag [#allocation4], 1
    %10 = vsyncpa %s9, 0
    loop: start=0, step=1, limit=4
    $region2: #{tpu_custom_call.1} parent=1 // loop_pre_header
      _
    $region3: #{tpu_custom_call.1} parent=1 // loop_header
      %s12 = sphi 0, %s16
      %p13 = scmp.ge.s32.totalorder %s12, 4
      %s22 = sphi 0, %s24
      %s25 = sphi 0, %s22
      %s26 = sphi 0, %s25
      %s42 = sphi 0, %s26
      %s46 = sphi 0, %s46
      %s48 = sphi 0, %s46
      %s49 = sphi 0, %s48
      %s63 = sphi 0, %s49
      %s67 = sphi 0, %s67
      %s69 = sphi 0, %s67
      %s70 = sphi 0, %s69
      %s84 = sphi 0, %s70
      %s90 = sphi 0, %s92
      %s93 = sphi 0, %s90
      %s94 = sphi 0, %s93
      %s110 = sphi 0, %s94
    $region4: #{tpu_custom_call.1} parent=1 // loop_header_branch
      %15 = sbr.rel (%p13) target = $region8
    $region5: #{tpu_custom_call.1} parent=1 // loop_body
      %s17 = ssub.s32 %s12, 1
      %s18 = ssub.s32 %s12, 2
      %s19 = sadd.s32 %s12, 1
      %s20 = ssub.s32 %s12, %s19
      %p21 = scmp.eq.s32.totalorder %s20, 0
      %s23 = sadd.s32 %s22, 1
      %s24 = scalar_select %p21, %s22, %s23
      %p27 = pneg %p21
      %p28 = scmp.eq.s32.totalorder %s12, 1
      %p29 = por %p27, %p28
      %p30 = scmp.ne.s32.totalorder %s22, %s25
      %p31 = scmp.eq.s32.totalorder %s12, 0
      %p32 = por %p30, %p31
      %p33 = scmp.ne.s32.totalorder %s22, %s25
      %p34 = scmp.eq.s32.totalorder %s17, 1
      %p35 = por %p33, %p34
      %p36 = scmp.ne.s32.totalorder %s25, %s26
      %p37 = scmp.eq.s32.totalorder %s17, 0
      %p38 = por %p36, %p37
      %p39 = scmp.ne.s32.totalorder %s25, %s26
      %p40 = scmp.eq.s32.totalorder %s18, 1
      %p41 = por %p39, %p40
      %p43 = scmp.ne.s32.totalorder %s26, %s42
      %p44 = scmp.eq.s32.totalorder %s18, 0
      %p45 = por %p43, %p44
      %s47 = sadd.s32 %s46, 1
      %p50 = scmp.eq.s32.totalorder %s12, 1
      %p51 = scmp.ne.s32.totalorder %s46, %s48
      %p52 = scmp.eq.s32.totalorder %s12, 0
      %p53 = por %p51, %p52
      %p54 = scmp.ne.s32.totalorder %s46, %s48
      %p55 = scmp.eq.s32.totalorder %s17, 1
      %p56 = por %p54, %p55
      %p57 = scmp.ne.s32.totalorder %s48, %s49
      %p58 = scmp.eq.s32.totalorder %s17, 0
      %p59 = por %p57, %p58
      %p60 = scmp.ne.s32.totalorder %s48, %s49
      %p61 = scmp.eq.s32.totalorder %s18, 1
      %p62 = por %p60, %p61
      %p64 = scmp.ne.s32.totalorder %s49, %s63
      %p65 = scmp.eq.s32.totalorder %s18, 0
      %p66 = por %p64, %p65
      %s68 = sadd.s32 %s67, 1
      %p71 = scmp.eq.s32.totalorder %s12, 1
      %p72 = scmp.ne.s32.totalorder %s67, %s69
      %p73 = scmp.eq.s32.totalorder %s12, 0
      %p74 = por %p72, %p73
      %p75 = scmp.ne.s32.totalorder %s67, %s69
      %p76 = scmp.eq.s32.totalorder %s17, 1
      %p77 = por %p75, %p76
      %p78 = scmp.ne.s32.totalorder %s69, %s70
      %p79 = scmp.eq.s32.totalorder %s17, 0
      %p80 = por %p78, %p79
      %p81 = scmp.ne.s32.totalorder %s69, %s70
      %p82 = scmp.eq.s32.totalorder %s18, 1
      %p83 = por %p81, %p82
      %p85 = scmp.ne.s32.totalorder %s70, %s84
      %p86 = scmp.eq.s32.totalorder %s18, 0
      %p87 = por %p85, %p86
      %s88 = ssub.s32 %s12, %s19
      %p89 = scmp.eq.s32.totalorder %s88, 0
      %s91 = sadd.s32 %s90, 1
      %s92 = scalar_select %p89, %s90, %s91
      %p95 = pneg %p89
      %p96 = scmp.eq.s32.totalorder %s12, 1
      %p97 = por %p95, %p96
      %p98 = scmp.ne.s32.totalorder %s90, %s93
      %p99 = scmp.eq.s32.totalorder %s12, 0
      %p100 = por %p98, %p99
      %p101 = scmp.ne.s32.totalorder %s90, %s93
      %p102 = scmp.eq.s32.totalorder %s17, 1
      %p103 = por %p101, %p102
      %p104 = scmp.ne.s32.totalorder %s93, %s94
      %p105 = scmp.eq.s32.totalorder %s17, 0
      %p106 = por %p104, %p105
      %p107 = scmp.ne.s32.totalorder %s93, %s94
      %p108 = scmp.eq.s32.totalorder %s18, 1
      %p109 = por %p107, %p108
      %p111 = scmp.ne.s32.totalorder %s94, %s110
      %p112 = scmp.eq.s32.totalorder %s18, 0
      %p113 = por %p111, %p112
      %p114 = scmp.le.s32.totalorder 1, %s12
      %p115 = scmp.lt.s32.totalorder %s12, 3
      %p116 = pnand %p114, %p115
      %p117 = pneg %p116
      // Predicated region
      $region9: #{tpu_custom_call.1} parent=5 // pred_check
        _
      $region10: #{tpu_custom_call.1} parent=5 // pred_check_branch
        %119 = sbr.rel (%p116) target = $region12
      $region11: #{tpu_custom_call.1} parent=5 // pred_region
        %s120 = ssub.s32 %s12, 1
        // Predicated region
        $region13: #{tpu_custom_call.1} parent=11 // pred_check
          %p121 = pneg %p59
        $region14: #{tpu_custom_call.1} parent=11 // pred_check_branch
          %123 = sbr.rel (%p121) target = $region16
        $region15: #{tpu_custom_call.1} parent=11 // pred_region
          _
        $region16: #{tpu_custom_call.1} parent=11 // pred_fallthru
          _
        // Predicated region
        $region17: #{tpu_custom_call.1} parent=11 // pred_check
          %p124 = pneg %p80
        $region18: #{tpu_custom_call.1} parent=11 // pred_check_branch
          %126 = sbr.rel (%p124) target = $region20
        $region19: #{tpu_custom_call.1} parent=11 // pred_region
          _
        $region20: #{tpu_custom_call.1} parent=11 // pred_fallthru
          _
      $region12: #{tpu_custom_call.1} parent=5 // pred_fallthru
        _
      %p127 = scmp.lt.s32.totalorder %s12, 2
      // Predicated region
      $region21: #{tpu_custom_call.1} parent=5 // pred_check
        %p128 = pneg %p127
      $region22: #{tpu_custom_call.1} parent=5 // pred_check_branch
        %130 = sbr.rel (%p128) target = $region24
      $region23: #{tpu_custom_call.1} parent=5 // pred_region
        // Predicated region
        $region25: #{tpu_custom_call.1} parent=23 // pred_check
          %p131 = pneg %p32
        $region26: #{tpu_custom_call.1} parent=23 // pred_check_branch
          %133 = sbr.rel (%p131) target = $region28
        $region27: #{tpu_custom_call.1} parent=23 // pred_region
          %s134 = smul.u32 2, %s12
          %p135 = scmp.lt.s32.totalorder %s134, 3
          %s136 = scalar_select %p135, %s134, 3
          %s137 = smul.addr %s136, 8
          %s138 = smul.addr %s137, 4
          %s139 = scalar_lea.vmem %s0, %s138
          %s140 = smul.u32 2, %s12
        $region28: #{tpu_custom_call.1} parent=23 // pred_fallthru
          _
      $region24: #{tpu_custom_call.1} parent=5 // pred_fallthru
        _
      %p141 = scmp.le.s32.totalorder 1, %s12
      %p142 = scmp.lt.s32.totalorder %s12, 3
      %p143 = pnand %p141, %p142
      %p144 = pneg %p143
      // Predicated region
      $region29: #{tpu_custom_call.1} parent=5 // pred_check
        _
      $region30: #{tpu_custom_call.1} parent=5 // pred_check_branch
        %146 = sbr.rel (%p143) target = $region32
      $region31: #{tpu_custom_call.1} parent=5 // pred_region
        %s147 = ssub.s32 %s12, 1
        %s148 = smul.u32 2, %s17
        %p149 = scmp.lt.s32.totalorder %s148, 3
        %s150 = scalar_select %p149, %s148, 3
        %s151 = smul.addr %s150, 8
        %s152 = smul.addr %s151, 4
        %s153 = scalar_lea.vmem %s0, %s152
        %p154 = pneg %p38
        %p155 = pneg %p35
        %p156 = pneg %p59
        %p157 = pneg %p56
        %p158 = pneg %p80
        %p159 = pneg %p77
        %p160 = pneg %p106
        %p161 = pneg %p103
        %s162 = sand.u32 %s93, 1
        %s163 = scalar_lea.sflag [#allocation4], %s162
        %s164 = sand.u32 %s93, 1
        %s165 = smul.addr %s164, 32
        %s166 = scalar_lea.vmem [#allocation3], %s165
        %s167 = smul.u32 2, %s17
        %p168 = scmp.lt.s32.totalorder %s167, 3
        %s169 = scalar_select %p168, %s167, 3
        %s170 = smul.addr %s169, 8
        %s171 = smul.addr %s170, 4
        %s172 = scalar_lea.vmem %s0, %s171
        %s173 = smul.u32 2, %s17
        %s174 = smul.u32 2, %s17
        %176 = vst [vmem:[#allocation2] sm:$0xff] 0
        %vm177 = vcmask 257024
        %178 = vst.msk [vmem:[#allocation2 + $0x8] sm:$0xf] %vm177, 0
        %179 = vst [vmem:[#allocation2 + $0xc] sm:$0xff] 0
        %180 = vst.msk [vmem:[#allocation2 + $0x14] sm:$0xf] %vm177, 0
        %181 = vst [vmem:[#allocation2 + $0x18] sm:$0xff] 0
        %182 = vst.msk [vmem:[#allocation2 + $0x20] sm:$0xf] %vm177, 0
        %183 = vst [vmem:[#allocation2 + $0x24] sm:$0xff] 0
        %184 = vst.msk [vmem:[#allocation2 + $0x2c] sm:$0xf] %vm177, 0
        %185 = vst [vmem:[#allocation2 + $0x30] sm:$0xff] 0
        %186 = vst.msk [vmem:[#allocation2 + $0x38] sm:$0xf] %vm177, 0
        %187 = vst [vmem:[#allocation2 + $0x3c] sm:$0xff] 0
        %188 = vst.msk [vmem:[#allocation2 + $0x44] sm:$0xf] %vm177, 0
        %189 = vst [vmem:[#allocation2 + $0x48] sm:$0xff] 0
        %190 = vst.msk [vmem:[#allocation2 + $0x50] sm:$0xf] %vm177, 0
        %191 = vst [vmem:[#allocation2 + $0x54] sm:$0xff] 0
        %192 = vst.msk [vmem:[#allocation2 + $0x5c] sm:$0xf] %vm177, 0
        %193 = vst [vmem:[#allocation2 + $0x60] sm:$0xff] 0
        %194 = vst.msk [vmem:[#allocation2 + $0x68] sm:$0xf] %vm177, 0
        %195 = vst [vmem:[#allocation2 + $0x6c] sm:$0xff] 0
        %196 = vst.msk [vmem:[#allocation2 + $0x74] sm:$0xf] %vm177, 0
        %197 = vst [vmem:[#allocation2 + $0x78] sm:$0xff] 0
        %198 = vst.msk [vmem:[#allocation2 + $0x80] sm:$0xf] %vm177, 0
        %199 = vst [vmem:[#allocation2 + $0x84] sm:$0xff] 0
        %200 = vst.msk [vmem:[#allocation2 + $0x8c] sm:$0xf] %vm177, 0
        %201 = vst [vmem:[#allocation2 + $0x90] sm:$0xff] 0
        %202 = vst.msk [vmem:[#allocation2 + $0x98] sm:$0xf] %vm177, 0
        %203 = vst [vmem:[#allocation2 + $0x9c] sm:$0xff] 0
        %204 = vst.msk [vmem:[#allocation2 + $0xa4] sm:$0xf] %vm177, 0
        %205 = vst [vmem:[#allocation2 + $0xa8] sm:$0xff] 0
        %206 = vst.msk [vmem:[#allocation2 + $0xb0] sm:$0xf] %vm177, 0
        %207 = vst [vmem:[#allocation2 + $0xb4] sm:$0xff] 0
        %208 = vst.msk [vmem:[#allocation2 + $0xbc] sm:$0xf] %vm177, 0
        %v209 = vld [vmem:[%s172] sm:$0xf]
        %v210 = vld [vmem:[%s172 + $0x4] sm:$0xf]
        %v211 = vld [vmem:[%s172 + $0x8] sm:$0xf]
        %v212 = vld [vmem:[%s172 + $0xc] sm:$0xf]
        %v213 = vld [vmem:[%s172 + $0x10] sm:$0xf]
        %v214 = vld [vmem:[%s172 + $0x14] sm:$0xf]
        %v215 = vld [vmem:[%s172 + $0x18] sm:$0xf]
        %v216 = vld [vmem:[%s172 + $0x20] sm:$0xf]
        %v217 = vld [vmem:[%s172 + $0x24] sm:$0xf]
        %v218 = vld [vmem:[%s172 + $0x28] sm:$0xf]
        %v219 = vld [vmem:[%s172 + $0x2c] sm:$0xf]
        %v220 = vld [vmem:[%s172 + $0x30] sm:$0xf]
        %v221 = vld [vmem:[%s172 + $0x34] sm:$0xf]
        %v222 = vld [vmem:[%s172 + $0x38] sm:$0xf]
        %v224 = vshrl.u32 %v209, 16
        %v226 = vrot.slane %v224, 7
        %v227 = vshll.u32 %v209, 16
        %v229 = vor.u32 %v226, %v227
        %v231 = vshrl.u32 %v210, 16
        %v233 = vrot.slane %v231, 7
        %v234 = vshll.u32 %v210, 16
        %v236 = vor.u32 %v233, %v234
        %v238 = vshrl.u32 %v211, 16
        %v240 = vrot.slane %v238, 7
        %v241 = vshll.u32 %v211, 16
        %v243 = vor.u32 %v240, %v241
        %v245 = vshrl.u32 %v212, 16
        %v247 = vrot.slane %v245, 7
        %v248 = vshll.u32 %v212, 16
        %v250 = vor.u32 %v247, %v248
        %v252 = vshrl.u32 %v213, 16
        %v254 = vrot.slane %v252, 7
        %v255 = vshll.u32 %v213, 16
        %v257 = vor.u32 %v254, %v255
        %v259 = vshrl.u32 %v214, 16
        %v261 = vrot.slane %v259, 7
        %v262 = vshll.u32 %v214, 16
        %v264 = vor.u32 %v261, %v262
        %v266 = vshrl.u32 %v215, 16
        %v268 = vrot.slane %v266, 7
        %v269 = vshll.u32 %v215, 16
        %v271 = vor.u32 %v268, %v269
        %v273 = vshrl.u32 %v216, 16
        %v275 = vrot.slane %v273, 7
        %v276 = vshll.u32 %v216, 16
        %v278 = vor.u32 %v275, %v276
        %v280 = vshrl.u32 %v217, 16
        %v282 = vrot.slane %v280, 7
        %v283 = vshll.u32 %v217, 16
        %v285 = vor.u32 %v282, %v283
        %v287 = vshrl.u32 %v218, 16
        %v289 = vrot.slane %v287, 7
        %v290 = vshll.u32 %v218, 16
        %v292 = vor.u32 %v289, %v290
        %v294 = vshrl.u32 %v219, 16
        %v296 = vrot.slane %v294, 7
        %v297 = vshll.u32 %v219, 16
        %v299 = vor.u32 %v296, %v297
        %v301 = vshrl.u32 %v220, 16
        %v303 = vrot.slane %v301, 7
        %v304 = vshll.u32 %v220, 16
        %v306 = vor.u32 %v303, %v304
        %v308 = vshrl.u32 %v221, 16
        %v310 = vrot.slane %v308, 7
        %v311 = vshll.u32 %v221, 16
        %v313 = vor.u32 %v310, %v311
        %v315 = vshrl.u32 %v222, 16
        %v317 = vrot.slane %v315, 7
        %v318 = vshll.u32 %v222, 16
        %v320 = vor.u32 %v317, %v318
        %s335 = scalar_lea.vmem [#allocation2], 12
        %vm336 = vcmask 257024
        %vm337 = vsmask.f32 7938
        %vm338 = vmand %vm336, %vm337
        %v339 = vld [vmem:[%s335] sm:$0xf]
        %v340 = vsel %vm338, %v229, %v339
        %341 = vst [vmem:[%s335] sm:$0xf] %v340
        %v342 = vld [vmem:[%s335 + $0xc] sm:$0xf]
        %v343 = vsel %vm338, %v236, %v342
        %344 = vst [vmem:[%s335 + $0xc] sm:$0xf] %v343
        %v345 = vld [vmem:[%s335 + $0x18] sm:$0xf]
        %v346 = vsel %vm338, %v243, %v345
        %347 = vst [vmem:[%s335 + $0x18] sm:$0xf] %v346
        %v348 = vld [vmem:[%s335 + $0x24] sm:$0xf]
        %v349 = vsel %vm338, %v250, %v348
        %350 = vst [vmem:[%s335 + $0x24] sm:$0xf] %v349
        %v351 = vld [vmem:[%s335 + $0x30] sm:$0xf]
        %v352 = vsel %vm338, %v257, %v351
        %353 = vst [vmem:[%s335 + $0x30] sm:$0xf] %v352
        %v354 = vld [vmem:[%s335 + $0x3c] sm:$0xf]
        %v355 = vsel %vm338, %v264, %v354
        %356 = vst [vmem:[%s335 + $0x3c] sm:$0xf] %v355
        %v357 = vld [vmem:[%s335 + $0x48] sm:$0xf]
        %v358 = vsel %vm338, %v271, %v357
        %359 = vst [vmem:[%s335 + $0x48] sm:$0xf] %v358
        %v360 = vld [vmem:[%s335 + $0x60] sm:$0xf]
        %v361 = vsel %vm338, %v278, %v360
        %362 = vst [vmem:[%s335 + $0x60] sm:$0xf] %v361
        %v363 = vld [vmem:[%s335 + $0x6c] sm:$0xf]
        %v364 = vsel %vm338, %v285, %v363
        %365 = vst [vmem:[%s335 + $0x6c] sm:$0xf] %v364
        %v366 = vld [vmem:[%s335 + $0x78] sm:$0xf]
        %v367 = vsel %vm338, %v292, %v366
        %368 = vst [vmem:[%s335 + $0x78] sm:$0xf] %v367
        %v369 = vld [vmem:[%s335 + $0x84] sm:$0xf]
        %v370 = vsel %vm338, %v299, %v369
        %371 = vst [vmem:[%s335 + $0x84] sm:$0xf] %v370
        %v372 = vld [vmem:[%s335 + $0x90] sm:$0xf]
        %v373 = vsel %vm338, %v306, %v372
        %374 = vst [vmem:[%s335 + $0x90] sm:$0xf] %v373
        %v375 = vld [vmem:[%s335 + $0x9c] sm:$0xf]
        %v376 = vsel %vm338, %v313, %v375
        %377 = vst [vmem:[%s335 + $0x9c] sm:$0xf] %v376
        %v378 = vld [vmem:[%s335 + $0xa8] sm:$0xf]
        %v379 = vsel %vm338, %v320, %v378
        %380 = vst [vmem:[%s335 + $0xa8] sm:$0xf] %v379
        %v381 = vld [vmem:[%s172] sm:$0xf]
        %v382 = vld [vmem:[%s172 + $0x4] sm:$0xf]
        %v383 = vld [vmem:[%s172 + $0x8] sm:$0xf]
        %v384 = vld [vmem:[%s172 + $0xc] sm:$0xf]
        %v385 = vld [vmem:[%s172 + $0x10] sm:$0xf]
        %v386 = vld [vmem:[%s172 + $0x14] sm:$0xf]
        %v387 = vld [vmem:[%s172 + $0x18] sm:$0xf]
        %v388 = vld [vmem:[%s172 + $0x20] sm:$0xf]
        %v389 = vld [vmem:[%s172 + $0x24] sm:$0xf]
        %v390 = vld [vmem:[%s172 + $0x28] sm:$0xf]
        %v391 = vld [vmem:[%s172 + $0x2c] sm:$0xf]
        %v392 = vld [vmem:[%s172 + $0x30] sm:$0xf]
        %v393 = vld [vmem:[%s172 + $0x34] sm:$0xf]
        %v394 = vld [vmem:[%s172 + $0x38] sm:$0xf]
        %409 = vrot.lane.b32.xlu0 %v381, 32
        %v410 = vpop.permute.xlu0 %409
        %411 = vrot.lane.b32.xlu0 %v382, 32
        %v412 = vpop.permute.xlu0 %411
        %413 = vrot.lane.b32.xlu0 %v383, 32
        %v414 = vpop.permute.xlu0 %413
        %415 = vrot.lane.b32.xlu0 %v384, 32
        %v416 = vpop.permute.xlu0 %415
        %417 = vrot.lane.b32.xlu0 %v385, 32
        %v418 = vpop.permute.xlu0 %417
        %419 = vrot.lane.b32.xlu0 %v386, 32
        %v420 = vpop.permute.xlu0 %419
        %421 = vrot.lane.b32.xlu0 %v387, 32
        %v422 = vpop.permute.xlu0 %421
        %423 = vrot.lane.b32.xlu0 %v388, 32
        %v424 = vpop.permute.xlu0 %423
        %425 = vrot.lane.b32.xlu0 %v389, 32
        %v426 = vpop.permute.xlu0 %425
        %427 = vrot.lane.b32.xlu0 %v390, 32
        %v428 = vpop.permute.xlu0 %427
        %429 = vrot.lane.b32.xlu0 %v391, 32
        %v430 = vpop.permute.xlu0 %429
        %431 = vrot.lane.b32.xlu0 %v392, 32
        %v432 = vpop.permute.xlu0 %431
        %433 = vrot.lane.b32.xlu0 %v393, 32
        %v434 = vpop.permute.xlu0 %433
        %435 = vrot.lane.b32.xlu0 %v394, 32
        %v436 = vpop.permute.xlu0 %435
        %vm451 = vcmask 519424
        %452 = vst.msk [vmem:[%s335] sm:$0xf] %vm451, %v410
        %453 = vst.msk [vmem:[%s335 + $0xc] sm:$0xf] %vm451, %v412
        %454 = vst.msk [vmem:[%s335 + $0x18] sm:$0xf] %vm451, %v414
        %455 = vst.msk [vmem:[%s335 + $0x24] sm:$0xf] %vm451, %v416
        %456 = vst.msk [vmem:[%s335 + $0x30] sm:$0xf] %vm451, %v418
        %457 = vst.msk [vmem:[%s335 + $0x3c] sm:$0xf] %vm451, %v420
        %458 = vst.msk [vmem:[%s335 + $0x48] sm:$0xf] %vm451, %v422
        %459 = vst.msk [vmem:[%s335 + $0x60] sm:$0xf] %vm451, %v424
        %460 = vst.msk [vmem:[%s335 + $0x6c] sm:$0xf] %vm451, %v426
        %461 = vst.msk [vmem:[%s335 + $0x78] sm:$0xf] %vm451, %v428
        %462 = vst.msk [vmem:[%s335 + $0x84] sm:$0xf] %vm451, %v430
        %463 = vst.msk [vmem:[%s335 + $0x90] sm:$0xf] %vm451, %v432
        %464 = vst.msk [vmem:[%s335 + $0x9c] sm:$0xf] %vm451, %v434
        %465 = vst.msk [vmem:[%s335 + $0xa8] sm:$0xf] %vm451, %v436
        %v466 = vld [vmem:[%s172] sm:$0xf]
        %v467 = vld [vmem:[%s172 + $0x4] sm:$0xf]
        %v468 = vld [vmem:[%s172 + $0x8] sm:$0xf]
        %v469 = vld [vmem:[%s172 + $0xc] sm:$0xf]
        %v470 = vld [vmem:[%s172 + $0x10] sm:$0xf]
        %v471 = vld [vmem:[%s172 + $0x14] sm:$0xf]
        %v472 = vld [vmem:[%s172 + $0x18] sm:$0xf]
        %v473 = vld [vmem:[%s172 + $0x20] sm:$0xf]
        %v474 = vld [vmem:[%s172 + $0x24] sm:$0xf]
        %v475 = vld [vmem:[%s172 + $0x28] sm:$0xf]
        %v476 = vld [vmem:[%s172 + $0x2c] sm:$0xf]
        %v477 = vld [vmem:[%s172 + $0x30] sm:$0xf]
        %v478 = vld [vmem:[%s172 + $0x34] sm:$0xf]
        %v479 = vld [vmem:[%s172 + $0x38] sm:$0xf]
        %v481 = vshrl.u32 %v466, 16
        %v483 = vrot.slane %v481, 4
        %v484 = vshll.u32 %v466, 16
        %v486 = vrot.slane %v484, 5
        %v487 = vor.u32 %v483, %v486
        %v488 = vrot.slane %v487, 4
        %v490 = vshrl.u32 %v467, 16
        %v492 = vrot.slane %v490, 4
        %v493 = vshll.u32 %v467, 16
        %v495 = vrot.slane %v493, 5
        %v496 = vor.u32 %v492, %v495
        %v497 = vrot.slane %v496, 4
        %v499 = vshrl.u32 %v468, 16
        %v501 = vrot.slane %v499, 4
        %v502 = vshll.u32 %v468, 16
        %v504 = vrot.slane %v502, 5
        %v505 = vor.u32 %v501, %v504
        %v506 = vrot.slane %v505, 4
        %v508 = vshrl.u32 %v469, 16
        %v510 = vrot.slane %v508, 4
        %v511 = vshll.u32 %v469, 16
        %v513 = vrot.slane %v511, 5
        %v514 = vor.u32 %v510, %v513
        %v515 = vrot.slane %v514, 4
        %v517 = vshrl.u32 %v470, 16
        %v519 = vrot.slane %v517, 4
        %v520 = vshll.u32 %v470, 16
        %v522 = vrot.slane %v520, 5
        %v523 = vor.u32 %v519, %v522
        %v524 = vrot.slane %v523, 4
        %v526 = vshrl.u32 %v471, 16
        %v528 = vrot.slane %v526, 4
        %v529 = vshll.u32 %v471, 16
        %v531 = vrot.slane %v529, 5
        %v532 = vor.u32 %v528, %v531
        %v533 = vrot.slane %v532, 4
        %v535 = vshrl.u32 %v472, 16
        %v537 = vrot.slane %v535, 4
        %v538 = vshll.u32 %v472, 16
        %v540 = vrot.slane %v538, 5
        %v541 = vor.u32 %v537, %v540
        %v542 = vrot.slane %v541, 4
        %v544 = vshrl.u32 %v473, 16
        %v546 = vrot.slane %v544, 4
        %v547 = vshll.u32 %v473, 16
        %v549 = vrot.slane %v547, 5
        %v550 = vor.u32 %v546, %v549
        %v551 = vrot.slane %v550, 4
        %v553 = vshrl.u32 %v474, 16
        %v555 = vrot.slane %v553, 4
        %v556 = vshll.u32 %v474, 16
        %v558 = vrot.slane %v556, 5
        %v559 = vor.u32 %v555, %v558
        %v560 = vrot.slane %v559, 4
        %v562 = vshrl.u32 %v475, 16
        %v564 = vrot.slane %v562, 4
        %v565 = vshll.u32 %v475, 16
        %v567 = vrot.slane %v565, 5
        %v568 = vor.u32 %v564, %v567
        %v569 = vrot.slane %v568, 4
        %v571 = vshrl.u32 %v476, 16
        %v573 = vrot.slane %v571, 4
        %v574 = vshll.u32 %v476, 16
        %v576 = vrot.slane %v574, 5
        %v577 = vor.u32 %v573, %v576
        %v578 = vrot.slane %v577, 4
        %v580 = vshrl.u32 %v477, 16
        %v582 = vrot.slane %v580, 4
        %v583 = vshll.u32 %v477, 16
        %v585 = vrot.slane %v583, 5
        %v586 = vor.u32 %v582, %v585
        %v587 = vrot.slane %v586, 4
        %v589 = vshrl.u32 %v478, 16
        %v591 = vrot.slane %v589, 4
        %v592 = vshll.u32 %v478, 16
        %v594 = vrot.slane %v592, 5
        %v595 = vor.u32 %v591, %v594
        %v596 = vrot.slane %v595, 4
        %v598 = vshrl.u32 %v479, 16
        %v600 = vrot.slane %v598, 4
        %v601 = vshll.u32 %v479, 16
        %v603 = vrot.slane %v601, 5
        %v604 = vor.u32 %v600, %v603
        %v605 = vrot.slane %v604, 4
        %606 = vrot.lane.b32.xlu0 %v488, 64
        %v607 = vpop.permute.xlu0 %606
        %608 = vrot.lane.b32.xlu0 %v497, 64
        %v609 = vpop.permute.xlu0 %608
        %610 = vrot.lane.b32.xlu0 %v506, 64
        %v611 = vpop.permute.xlu0 %610
        %612 = vrot.lane.b32.xlu0 %v515, 64
        %v613 = vpop.permute.xlu0 %612
        %614 = vrot.lane.b32.xlu0 %v524, 64
        %v615 = vpop.permute.xlu0 %614
        %616 = vrot.lane.b32.xlu0 %v533, 64
        %v617 = vpop.permute.xlu0 %616
        %618 = vrot.lane.b32.xlu0 %v542, 64
        %v619 = vpop.permute.xlu0 %618
        %620 = vrot.lane.b32.xlu0 %v551, 64
        %v621 = vpop.permute.xlu0 %620
        %622 = vrot.lane.b32.xlu0 %v560, 64
        %v623 = vpop.permute.xlu0 %622
        %624 = vrot.lane.b32.xlu0 %v569, 64
        %v625 = vpop.permute.xlu0 %624
        %626 = vrot.lane.b32.xlu0 %v578, 64
        %v627 = vpop.permute.xlu0 %626
        %628 = vrot.lane.b32.xlu0 %v587, 64
        %v629 = vpop.permute.xlu0 %628
        %630 = vrot.lane.b32.xlu0 %v596, 64
        %v631 = vpop.permute.xlu0 %630
        %632 = vrot.lane.b32.xlu0 %v605, 64
        %v633 = vpop.permute.xlu0 %632
        %vm648 = vcmask 781824
        %vm649 = vsmask.f32 3328
        %vm650 = vmand %vm648, %vm649
        %v651 = vld [vmem:[%s335] sm:$0xf]
        %v652 = vsel %vm650, %v607, %v651
        %653 = vst [vmem:[%s335] sm:$0xf] %v652
        %v654 = vld [vmem:[%s335 + $0xc] sm:$0xf]
        %v655 = vsel %vm650, %v609, %v654
        %656 = vst [vmem:[%s335 + $0xc] sm:$0xf] %v655
        %v657 = vld [vmem:[%s335 + $0x18] sm:$0xf]
        %v658 = vsel %vm650, %v611, %v657
        %659 = vst [vmem:[%s335 + $0x18] sm:$0xf] %v658
        %v660 = vld [vmem:[%s335 + $0x24] sm:$0xf]
        %v661 = vsel %vm650, %v613, %v660
        %662 = vst [vmem:[%s335 + $0x24] sm:$0xf] %v661
        %v663 = vld [vmem:[%s335 + $0x30] sm:$0xf]
        %v664 = vsel %vm650, %v615, %v663
        %665 = vst [vmem:[%s335 + $0x30] sm:$0xf] %v664
        %v666 = vld [vmem:[%s335 + $0x3c] sm:$0xf]
        %v667 = vsel %vm650, %v617, %v666
        %668 = vst [vmem:[%s335 + $0x3c] sm:$0xf] %v667
        %v669 = vld [vmem:[%s335 + $0x48] sm:$0xf]
        %v670 = vsel %vm650, %v619, %v669
        %671 = vst [vmem:[%s335 + $0x48] sm:$0xf] %v670
        %v672 = vld [vmem:[%s335 + $0x60] sm:$0xf]
        %v673 = vsel %vm650, %v621, %v672
        %674 = vst [vmem:[%s335 + $0x60] sm:$0xf] %v673
        %v675 = vld [vmem:[%s335 + $0x6c] sm:$0xf]
        %v676 = vsel %vm650, %v623, %v675
        %677 = vst [vmem:[%s335 + $0x6c] sm:$0xf] %v676
        %v678 = vld [vmem:[%s335 + $0x78] sm:$0xf]
        %v679 = vsel %vm650, %v625, %v678
        %680 = vst [vmem:[%s335 + $0x78] sm:$0xf] %v679
        %v681 = vld [vmem:[%s335 + $0x84] sm:$0xf]
        %v682 = vsel %vm650, %v627, %v681
        %683 = vst [vmem:[%s335 + $0x84] sm:$0xf] %v682
        %v684 = vld [vmem:[%s335 + $0x90] sm:$0xf]
        %v685 = vsel %vm650, %v629, %v684
        %686 = vst [vmem:[%s335 + $0x90] sm:$0xf] %v685
        %v687 = vld [vmem:[%s335 + $0x9c] sm:$0xf]
        %v688 = vsel %vm650, %v631, %v687
        %689 = vst [vmem:[%s335 + $0x9c] sm:$0xf] %v688
        %v690 = vld [vmem:[%s335 + $0xa8] sm:$0xf]
        %v691 = vsel %vm650, %v633, %v690
        %692 = vst [vmem:[%s335 + $0xa8] sm:$0xf] %v691
        %v693 = vld [vmem:[%s172] sm:$0xf]
        %v694 = vld [vmem:[%s172 + $0x4] sm:$0xf]
        %v695 = vld [vmem:[%s172 + $0x8] sm:$0xf]
        %v696 = vld [vmem:[%s172 + $0xc] sm:$0xf]
        %v697 = vld [vmem:[%s172 + $0x10] sm:$0xf]
        %v698 = vld [vmem:[%s172 + $0x14] sm:$0xf]
        %v699 = vld [vmem:[%s172 + $0x18] sm:$0xf]
        %v700 = vld [vmem:[%s172 + $0x1c] sm:$0xf]
        %v701 = vld [vmem:[%s172 + $0x20] sm:$0xf]
        %v702 = vld [vmem:[%s172 + $0x24] sm:$0xf]
        %v703 = vld [vmem:[%s172 + $0x28] sm:$0xf]
        %v704 = vld [vmem:[%s172 + $0x2c] sm:$0xf]
        %v705 = vld [vmem:[%s172 + $0x30] sm:$0xf]
        %v706 = vld [vmem:[%s172 + $0x34] sm:$0xf]
        %v707 = vld [vmem:[%s172 + $0x38] sm:$0xf]
        %v708 = vld [vmem:[%s172 + $0x3c] sm:$0xf]
        %v710 = vshrl.u32 %v693, 16
        %v712 = vrot.slane %v710, 7
        %v713 = vshll.u32 %v693, 16
        %v715 = vor.u32 %v712, %v713
        %v717 = vshrl.u32 %v694, 16
        %v719 = vrot.slane %v717, 7
        %v720 = vshll.u32 %v694, 16
        %v722 = vor.u32 %v719, %v720
        %v724 = vshrl.u32 %v695, 16
        %v726 = vrot.slane %v724, 7
        %v727 = vshll.u32 %v695, 16
        %v729 = vor.u32 %v726, %v727
        %v731 = vshrl.u32 %v696, 16
        %v733 = vrot.slane %v731, 7
        %v734 = vshll.u32 %v696, 16
        %v736 = vor.u32 %v733, %v734
        %v738 = vshrl.u32 %v697, 16
        %v740 = vrot.slane %v738, 7
        %v741 = vshll.u32 %v697, 16
        %v743 = vor.u32 %v740, %v741
        %v745 = vshrl.u32 %v698, 16
        %v747 = vrot.slane %v745, 7
        %v748 = vshll.u32 %v698, 16
        %v750 = vor.u32 %v747, %v748
        %v752 = vshrl.u32 %v699, 16
        %v754 = vrot.slane %v752, 7
        %v755 = vshll.u32 %v699, 16
        %v757 = vor.u32 %v754, %v755
        %v759 = vshrl.u32 %v700, 16
        %v761 = vrot.slane %v759, 7
        %v762 = vshll.u32 %v700, 16
        %v764 = vor.u32 %v761, %v762
        %v766 = vshrl.u32 %v701, 16
        %v768 = vrot.slane %v766, 7
        %v769 = vshll.u32 %v701, 16
        %v771 = vor.u32 %v768, %v769
        %v773 = vshrl.u32 %v702, 16
        %v775 = vrot.slane %v773, 7
        %v776 = vshll.u32 %v702, 16
        %v778 = vor.u32 %v775, %v776
        %v780 = vshrl.u32 %v703, 16
        %v782 = vrot.slane %v780, 7
        %v783 = vshll.u32 %v703, 16
        %v785 = vor.u32 %v782, %v783
        %v787 = vshrl.u32 %v704, 16
        %v789 = vrot.slane %v787, 7
        %v790 = vshll.u32 %v704, 16
        %v792 = vor.u32 %v789, %v790
        %v794 = vshrl.u32 %v705, 16
        %v796 = vrot.slane %v794, 7
        %v797 = vshll.u32 %v705, 16
        %v799 = vor.u32 %v796, %v797
        %v801 = vshrl.u32 %v706, 16
        %v803 = vrot.slane %v801, 7
        %v804 = vshll.u32 %v706, 16
        %v806 = vor.u32 %v803, %v804
        %v808 = vshrl.u32 %v707, 16
        %v810 = vrot.slane %v808, 7
        %v811 = vshll.u32 %v707, 16
        %v813 = vor.u32 %v810, %v811
        %v815 = vshrl.u32 %v708, 16
        %v817 = vrot.slane %v815, 7
        %v818 = vshll.u32 %v708, 16
        %v820 = vor.u32 %v817, %v818
        %821 = vrot.lane.b32.xlu0 %v715, 96
        %v822 = vpop.permute.xlu0 %821
        %823 = vrot.lane.b32.xlu0 %v722, 96
        %v824 = vpop.permute.xlu0 %823
        %825 = vrot.lane.b32.xlu0 %v729, 96
        %v826 = vpop.permute.xlu0 %825
        %827 = vrot.lane.b32.xlu0 %v736, 96
        %v828 = vpop.permute.xlu0 %827
        %829 = vrot.lane.b32.xlu0 %v743, 96
        %v830 = vpop.permute.xlu0 %829
        %831 = vrot.lane.b32.xlu0 %v750, 96
        %v832 = vpop.permute.xlu0 %831
        %833 = vrot.lane.b32.xlu0 %v757, 96
        %v834 = vpop.permute.xlu0 %833
        %835 = vrot.lane.b32.xlu0 %v764, 96
        %v836 = vpop.permute.xlu0 %835
        %837 = vrot.lane.b32.xlu0 %v771, 96
        %v838 = vpop.permute.xlu0 %837
        %839 = vrot.lane.b32.xlu0 %v778, 96
        %v840 = vpop.permute.xlu0 %839
        %841 = vrot.lane.b32.xlu0 %v785, 96
        %v842 = vpop.permute.xlu0 %841
        %843 = vrot.lane.b32.xlu0 %v792, 96
        %v844 = vpop.permute.xlu0 %843
        %845 = vrot.lane.b32.xlu0 %v799, 96
        %v846 = vpop.permute.xlu0 %845
        %847 = vrot.lane.b32.xlu0 %v806, 96
        %v848 = vpop.permute.xlu0 %847
        %849 = vrot.lane.b32.xlu0 %v813, 96
        %v850 = vpop.permute.xlu0 %849
        %851 = vrot.lane.b32.xlu0 %v820, 96
        %v852 = vpop.permute.xlu0 %851
        %vm869 = vcmask 1044224
        %vm870 = vmand %vm869, %vm337
        %v871 = vld [vmem:[#allocation2] sm:$0xf]
        %v872 = vsel %vm870, %v822, %v871
        %873 = vst [vmem:[#allocation2] sm:$0xf] %v872
        %v874 = vld [vmem:[#allocation2 + $0xc] sm:$0xf]
        %v875 = vsel %vm870, %v824, %v874
        %876 = vst [vmem:[#allocation2 + $0xc] sm:$0xf] %v875
        %v877 = vld [vmem:[#allocation2 + $0x18] sm:$0xf]
        %v878 = vsel %vm870, %v826, %v877
        %879 = vst [vmem:[#allocation2 + $0x18] sm:$0xf] %v878
        %v880 = vld [vmem:[#allocation2 + $0x24] sm:$0xf]
        %v881 = vsel %vm870, %v828, %v880
        %882 = vst [vmem:[#allocation2 + $0x24] sm:$0xf] %v881
        %v883 = vld [vmem:[#allocation2 + $0x30] sm:$0xf]
        %v884 = vsel %vm870, %v830, %v883
        %885 = vst [vmem:[#allocation2 + $0x30] sm:$0xf] %v884
        %v886 = vld [vmem:[#allocation2 + $0x3c] sm:$0xf]
        %v887 = vsel %vm870, %v832, %v886
        %888 = vst [vmem:[#allocation2 + $0x3c] sm:$0xf] %v887
        %v889 = vld [vmem:[#allocation2 + $0x48] sm:$0xf]
        %v890 = vsel %vm870, %v834, %v889
        %891 = vst [vmem:[#allocation2 + $0x48] sm:$0xf] %v890
        %v892 = vld [vmem:[#allocation2 + $0x54] sm:$0xf]
        %v893 = vsel %vm870, %v836, %v892
        %894 = vst [vmem:[#allocation2 + $0x54] sm:$0xf] %v893
        %v895 = vld [vmem:[#allocation2 + $0x60] sm:$0xf]
        %v896 = vsel %vm870, %v838, %v895
        %897 = vst [vmem:[#allocation2 + $0x60] sm:$0xf] %v896
        %v898 = vld [vmem:[#allocation2 + $0x6c] sm:$0xf]
        %v899 = vsel %vm870, %v840, %v898
        %900 = vst [vmem:[#allocation2 + $0x6c] sm:$0xf] %v899
        %v901 = vld [vmem:[#allocation2 + $0x78] sm:$0xf]
        %v902 = vsel %vm870, %v842, %v901
        %903 = vst [vmem:[#allocation2 + $0x78] sm:$0xf] %v902
        %v904 = vld [vmem:[#allocation2 + $0x84] sm:$0xf]
        %v905 = vsel %vm870, %v844, %v904
        %906 = vst [vmem:[#allocation2 + $0x84] sm:$0xf] %v905
        %v907 = vld [vmem:[#allocation2 + $0x90] sm:$0xf]
        %v908 = vsel %vm870, %v846, %v907
        %909 = vst [vmem:[#allocation2 + $0x90] sm:$0xf] %v908
        %v910 = vld [vmem:[#allocation2 + $0x9c] sm:$0xf]
        %v911 = vsel %vm870, %v848, %v910
        %912 = vst [vmem:[#allocation2 + $0x9c] sm:$0xf] %v911
        %v913 = vld [vmem:[#allocation2 + $0xa8] sm:$0xf]
        %v914 = vsel %vm870, %v850, %v913
        %915 = vst [vmem:[#allocation2 + $0xa8] sm:$0xf] %v914
        %v916 = vld [vmem:[#allocation2 + $0xb4] sm:$0xf]
        %v917 = vsel %vm870, %v852, %v916
        %918 = vst [vmem:[#allocation2 + $0xb4] sm:$0xf] %v917
        %v919 = vld [vmem:[%s172] sm:$0xf]
        %v920 = vld [vmem:[%s172 + $0x4] sm:$0xf]
        %v921 = vld [vmem:[%s172 + $0x8] sm:$0xf]
        %v922 = vld [vmem:[%s172 + $0xc] sm:$0xf]
        %v923 = vld [vmem:[%s172 + $0x10] sm:$0xf]
        %v924 = vld [vmem:[%s172 + $0x14] sm:$0xf]
        %v925 = vld [vmem:[%s172 + $0x18] sm:$0xf]
        %v926 = vld [vmem:[%s172 + $0x1c] sm:$0xf]
        %v927 = vld [vmem:[%s172 + $0x20] sm:$0xf]
        %v928 = vld [vmem:[%s172 + $0x24] sm:$0xf]
        %v929 = vld [vmem:[%s172 + $0x28] sm:$0xf]
        %v930 = vld [vmem:[%s172 + $0x2c] sm:$0xf]
        %v931 = vld [vmem:[%s172 + $0x30] sm:$0xf]
        %v932 = vld [vmem:[%s172 + $0x34] sm:$0xf]
        %v933 = vld [vmem:[%s172 + $0x38] sm:$0xf]
        %v934 = vld [vmem:[%s172 + $0x3c] sm:$0xf]
        %935 = vst.msk [vmem:[#allocation2 + $0x4] sm:$0xf] %vm177, %v919
        %936 = vst.msk [vmem:[#allocation2 + $0x10] sm:$0xf] %vm177, %v920
        %937 = vst.msk [vmem:[#allocation2 + $0x1c] sm:$0xf] %vm177, %v921
        %938 = vst.msk [vmem:[#allocation2 + $0x28] sm:$0xf] %vm177, %v922
        %939 = vst.msk [vmem:[#allocation2 + $0x34] sm:$0xf] %vm177, %v923
        %940 = vst.msk [vmem:[#allocation2 + $0x40] sm:$0xf] %vm177, %v924
        %941 = vst.msk [vmem:[#allocation2 + $0x4c] sm:$0xf] %vm177, %v925
        %942 = vst.msk [vmem:[#allocation2 + $0x58] sm:$0xf] %vm177, %v926
        %943 = vst.msk [vmem:[#allocation2 + $0x64] sm:$0xf] %vm177, %v927
        %944 = vst.msk [vmem:[#allocation2 + $0x70] sm:$0xf] %vm177, %v928
        %945 = vst.msk [vmem:[#allocation2 + $0x7c] sm:$0xf] %vm177, %v929
        %946 = vst.msk [vmem:[#allocation2 + $0x88] sm:$0xf] %vm177, %v930
        %947 = vst.msk [vmem:[#allocation2 + $0x94] sm:$0xf] %vm177, %v931
        %948 = vst.msk [vmem:[#allocation2 + $0xa0] sm:$0xf] %vm177, %v932
        %949 = vst.msk [vmem:[#allocation2 + $0xac] sm:$0xf] %vm177, %v933
        %950 = vst.msk [vmem:[#allocation2 + $0xb8] sm:$0xf] %vm177, %v934
        %v951 = vld [vmem:[%s172] sm:$0xf]
        %v952 = vld [vmem:[%s172 + $0x4] sm:$0xf]
        %v953 = vld [vmem:[%s172 + $0x8] sm:$0xf]
        %v954 = vld [vmem:[%s172 + $0xc] sm:$0xf]
        %v955 = vld [vmem:[%s172 + $0x10] sm:$0xf]
        %v956 = vld [vmem:[%s172 + $0x14] sm:$0xf]
        %v957 = vld [vmem:[%s172 + $0x18] sm:$0xf]
        %v958 = vld [vmem:[%s172 + $0x1c] sm:$0xf]
        %v959 = vld [vmem:[%s172 + $0x20] sm:$0xf]
        %v960 = vld [vmem:[%s172 + $0x24] sm:$0xf]
        %v961 = vld [vmem:[%s172 + $0x28] sm:$0xf]
        %v962 = vld [vmem:[%s172 + $0x2c] sm:$0xf]
        %v963 = vld [vmem:[%s172 + $0x30] sm:$0xf]
        %v964 = vld [vmem:[%s172 + $0x34] sm:$0xf]
        %v965 = vld [vmem:[%s172 + $0x38] sm:$0xf]
        %v966 = vld [vmem:[%s172 + $0x3c] sm:$0xf]
        %v968 = vshrl.u32 %v951, 16
        %v970 = vrot.slane %v968, 4
        %v971 = vshll.u32 %v951, 16
        %v973 = vrot.slane %v971, 5
        %v974 = vor.u32 %v970, %v973
        %v975 = vrot.slane %v974, 4
        %v977 = vshrl.u32 %v952, 16
        %v979 = vrot.slane %v977, 4
        %v980 = vshll.u32 %v952, 16
        %v982 = vrot.slane %v980, 5
        %v983 = vor.u32 %v979, %v982
        %v984 = vrot.slane %v983, 4
        %v986 = vshrl.u32 %v953, 16
        %v988 = vrot.slane %v986, 4
        %v989 = vshll.u32 %v953, 16
        %v991 = vrot.slane %v989, 5
        %v992 = vor.u32 %v988, %v991
        %v993 = vrot.slane %v992, 4
        %v995 = vshrl.u32 %v954, 16
        %v997 = vrot.slane %v995, 4
        %v998 = vshll.u32 %v954, 16
        %v1000 = vrot.slane %v998, 5
        %v1001 = vor.u32 %v997, %v1000
        %v1002 = vrot.slane %v1001, 4
        %v1004 = vshrl.u32 %v955, 16
        %v1006 = vrot.slane %v1004, 4
        %v1007 = vshll.u32 %v955, 16
        %v1009 = vrot.slane %v1007, 5
        %v1010 = vor.u32 %v1006, %v1009
        %v1011 = vrot.slane %v1010, 4
        %v1013 = vshrl.u32 %v956, 16
        %v1015 = vrot.slane %v1013, 4
        %v1016 = vshll.u32 %v956, 16
        %v1018 = vrot.slane %v1016, 5
        %v1019 = vor.u32 %v1015, %v1018
        %v1020 = vrot.slane %v1019, 4
        %v1022 = vshrl.u32 %v957, 16
        %v1024 = vrot.slane %v1022, 4
        %v1025 = vshll.u32 %v957, 16
        %v1027 = vrot.slane %v1025, 5
        %v1028 = vor.u32 %v1024, %v1027
        %v1029 = vrot.slane %v1028, 4
        %v1031 = vshrl.u32 %v958, 16
        %v1033 = vrot.slane %v1031, 4
        %v1034 = vshll.u32 %v958, 16
        %v1036 = vrot.slane %v1034, 5
        %v1037 = vor.u32 %v1033, %v1036
        %v1038 = vrot.slane %v1037, 4
        %v1040 = vshrl.u32 %v959, 16
        %v1042 = vrot.slane %v1040, 4
        %v1043 = vshll.u32 %v959, 16
        %v1045 = vrot.slane %v1043, 5
        %v1046 = vor.u32 %v1042, %v1045
        %v1047 = vrot.slane %v1046, 4
        %v1049 = vshrl.u32 %v960, 16
        %v1051 = vrot.slane %v1049, 4
        %v1052 = vshll.u32 %v960, 16
        %v1054 = vrot.slane %v1052, 5
        %v1055 = vor.u32 %v1051, %v1054
        %v1056 = vrot.slane %v1055, 4
        %v1058 = vshrl.u32 %v961, 16
        %v1060 = vrot.slane %v1058, 4
        %v1061 = vshll.u32 %v961, 16
        %v1063 = vrot.slane %v1061, 5
        %v1064 = vor.u32 %v1060, %v1063
        %v1065 = vrot.slane %v1064, 4
        %v1067 = vshrl.u32 %v962, 16
        %v1069 = vrot.slane %v1067, 4
        %v1070 = vshll.u32 %v962, 16
        %v1072 = vrot.slane %v1070, 5
        %v1073 = vor.u32 %v1069, %v1072
        %v1074 = vrot.slane %v1073, 4
        %v1076 = vshrl.u32 %v963, 16
        %v1078 = vrot.slane %v1076, 4
        %v1079 = vshll.u32 %v963, 16
        %v1081 = vrot.slane %v1079, 5
        %v1082 = vor.u32 %v1078, %v1081
        %v1083 = vrot.slane %v1082, 4
        %v1085 = vshrl.u32 %v964, 16
        %v1087 = vrot.slane %v1085, 4
        %v1088 = vshll.u32 %v964, 16
        %v1090 = vrot.slane %v1088, 5
        %v1091 = vor.u32 %v1087, %v1090
        %v1092 = vrot.slane %v1091, 4
        %v1094 = vshrl.u32 %v965, 16
        %v1096 = vrot.slane %v1094, 4
        %v1097 = vshll.u32 %v965, 16
        %v1099 = vrot.slane %v1097, 5
        %v1100 = vor.u32 %v1096, %v1099
        %v1101 = vrot.slane %v1100, 4
        %v1103 = vshrl.u32 %v966, 16
        %v1105 = vrot.slane %v1103, 4
        %v1106 = vshll.u32 %v966, 16
        %v1108 = vrot.slane %v1106, 5
        %v1109 = vor.u32 %v1105, %v1108
        %v1110 = vrot.slane %v1109, 4
        %1111 = vrot.lane.b32.xlu0 %v975, 32
        %v1112 = vpop.permute.xlu0 %1111
        %1113 = vrot.lane.b32.xlu0 %v984, 32
        %v1114 = vpop.permute.xlu0 %1113
        %1115 = vrot.lane.b32.xlu0 %v993, 32
        %v1116 = vpop.permute.xlu0 %1115
        %1117 = vrot.lane.b32.xlu0 %v1002, 32
        %v1118 = vpop.permute.xlu0 %1117
        %1119 = vrot.lane.b32.xlu0 %v1011, 32
        %v1120 = vpop.permute.xlu0 %1119
        %1121 = vrot.lane.b32.xlu0 %v1020, 32
        %v1122 = vpop.permute.xlu0 %1121
        %1123 = vrot.lane.b32.xlu0 %v1029, 32
        %v1124 = vpop.permute.xlu0 %1123
        %1125 = vrot.lane.b32.xlu0 %v1038, 32
        %v1126 = vpop.permute.xlu0 %1125
        %1127 = vrot.lane.b32.xlu0 %v1047, 32
        %v1128 = vpop.permute.xlu0 %1127
        %1129 = vrot.lane.b32.xlu0 %v1056, 32
        %v1130 = vpop.permute.xlu0 %1129
        %1131 = vrot.lane.b32.xlu0 %v1065, 32
        %v1132 = vpop.permute.xlu0 %1131
        %1133 = vrot.lane.b32.xlu0 %v1074, 32
        %v1134 = vpop.permute.xlu0 %1133
        %1135 = vrot.lane.b32.xlu0 %v1083, 32
        %v1136 = vpop.permute.xlu0 %1135
        %1137 = vrot.lane.b32.xlu0 %v1092, 32
        %v1138 = vpop.permute.xlu0 %1137
        %1139 = vrot.lane.b32.xlu0 %v1101, 32
        %v1140 = vpop.permute.xlu0 %1139
        %1141 = vrot.lane.b32.xlu0 %v1110, 32
        %v1142 = vpop.permute.xlu0 %1141
        %vm1159 = vcmask 519424
        %vm1160 = vmand %vm1159, %vm649
        %v1161 = vld [vmem:[#allocation2 + $0x4] sm:$0xf]
        %v1162 = vsel %vm1160, %v1112, %v1161
        %1163 = vst [vmem:[#allocation2 + $0x4] sm:$0xf] %v1162
        %v1164 = vld [vmem:[#allocation2 + $0x10] sm:$0xf]
        %v1165 = vsel %vm1160, %v1114, %v1164
        %1166 = vst [vmem:[#allocation2 + $0x10] sm:$0xf] %v1165
        %v1167 = vld [vmem:[#allocation2 + $0x1c] sm:$0xf]
        %v1168 = vsel %vm1160, %v1116, %v1167
        %1169 = vst [vmem:[#allocation2 + $0x1c] sm:$0xf] %v1168
        %v1170 = vld [vmem:[#allocation2 + $0x28] sm:$0xf]
        %v1171 = vsel %vm1160, %v1118, %v1170
        %1172 = vst [vmem:[#allocation2 + $0x28] sm:$0xf] %v1171
        %v1173 = vld [vmem:[#allocation2 + $0x34] sm:$0xf]
        %v1174 = vsel %vm1160, %v1120, %v1173
        %1175 = vst [vmem:[#allocation2 + $0x34] sm:$0xf] %v1174
        %v1176 = vld [vmem:[#allocation2 + $0x40] sm:$0xf]
        %v1177 = vsel %vm1160, %v1122, %v1176
        %1178 = vst [vmem:[#allocation2 + $0x40] sm:$0xf] %v1177
        %v1179 = vld [vmem:[#allocation2 + $0x4c] sm:$0xf]
        %v1180 = vsel %vm1160, %v1124, %v1179
        %1181 = vst [vmem:[#allocation2 + $0x4c] sm:$0xf] %v1180
        %v1182 = vld [vmem:[#allocation2 + $0x58] sm:$0xf]
        %v1183 = vsel %vm1160, %v1126, %v1182
        %1184 = vst [vmem:[#allocation2 + $0x58] sm:$0xf] %v1183
        %v1185 = vld [vmem:[#allocation2 + $0x64] sm:$0xf]
        %v1186 = vsel %vm1160, %v1128, %v1185
        %1187 = vst [vmem:[#allocation2 + $0x64] sm:$0xf] %v1186
        %v1188 = vld [vmem:[#allocation2 + $0x70] sm:$0xf]
        %v1189 = vsel %vm1160, %v1130, %v1188
        %1190 = vst [vmem:[#allocation2 + $0x70] sm:$0xf] %v1189
        %v1191 = vld [vmem:[#allocation2 + $0x7c] sm:$0xf]
        %v1192 = vsel %vm1160, %v1132, %v1191
        %1193 = vst [vmem:[#allocation2 + $0x7c] sm:$0xf] %v1192
        %v1194 = vld [vmem:[#allocation2 + $0x88] sm:$0xf]
        %v1195 = vsel %vm1160, %v1134, %v1194
        %1196 = vst [vmem:[#allocation2 + $0x88] sm:$0xf] %v1195
        %v1197 = vld [vmem:[#allocation2 + $0x94] sm:$0xf]
        %v1198 = vsel %vm1160, %v1136, %v1197
        %1199 = vst [vmem:[#allocation2 + $0x94] sm:$0xf] %v1198
        %v1200 = vld [vmem:[#allocation2 + $0xa0] sm:$0xf]
        %v1201 = vsel %vm1160, %v1138, %v1200
        %1202 = vst [vmem:[#allocation2 + $0xa0] sm:$0xf] %v1201
        %v1203 = vld [vmem:[#allocation2 + $0xac] sm:$0xf]
        %v1204 = vsel %vm1160, %v1140, %v1203
        %1205 = vst [vmem:[#allocation2 + $0xac] sm:$0xf] %v1204
        %v1206 = vld [vmem:[#allocation2 + $0xb8] sm:$0xf]
        %v1207 = vsel %vm1160, %v1142, %v1206
        %1208 = vst [vmem:[#allocation2 + $0xb8] sm:$0xf] %v1207
        %s1209 = scalar_lea.vmem %s172, 4
        %v1210 = vld [vmem:[%s1209] sm:$0xf]
        %v1211 = vld [vmem:[%s1209 + $0x4] sm:$0xf]
        %v1212 = vld [vmem:[%s1209 + $0x8] sm:$0xf]
        %v1213 = vld [vmem:[%s1209 + $0xc] sm:$0xf]
        %v1214 = vld [vmem:[%s1209 + $0x10] sm:$0xf]
        %v1215 = vld [vmem:[%s1209 + $0x14] sm:$0xf]
        %v1216 = vld [vmem:[%s1209 + $0x18] sm:$0xf]
        %v1217 = vld [vmem:[%s1209 + $0x20] sm:$0xf]
        %v1218 = vld [vmem:[%s1209 + $0x24] sm:$0xf]
        %v1219 = vld [vmem:[%s1209 + $0x28] sm:$0xf]
        %v1220 = vld [vmem:[%s1209 + $0x2c] sm:$0xf]
        %v1221 = vld [vmem:[%s1209 + $0x30] sm:$0xf]
        %v1222 = vld [vmem:[%s1209 + $0x34] sm:$0xf]
        %v1223 = vld [vmem:[%s1209 + $0x38] sm:$0xf]
        %v1225 = vshrl.u32 %v1210, 16
        %v1227 = vrot.slane %v1225, 7
        %v1228 = vshll.u32 %v1210, 16
        %v1230 = vor.u32 %v1227, %v1228
        %v1232 = vshrl.u32 %v1211, 16
        %v1234 = vrot.slane %v1232, 7
        %v1235 = vshll.u32 %v1211, 16
        %v1237 = vor.u32 %v1234, %v1235
        %v1239 = vshrl.u32 %v1212, 16
        %v1241 = vrot.slane %v1239, 7
        %v1242 = vshll.u32 %v1212, 16
        %v1244 = vor.u32 %v1241, %v1242
        %v1246 = vshrl.u32 %v1213, 16
        %v1248 = vrot.slane %v1246, 7
        %v1249 = vshll.u32 %v1213, 16
        %v1251 = vor.u32 %v1248, %v1249
        %v1253 = vshrl.u32 %v1214, 16
        %v1255 = vrot.slane %v1253, 7
        %v1256 = vshll.u32 %v1214, 16
        %v1258 = vor.u32 %v1255, %v1256
        %v1260 = vshrl.u32 %v1215, 16
        %v1262 = vrot.slane %v1260, 7
        %v1263 = vshll.u32 %v1215, 16
        %v1265 = vor.u32 %v1262, %v1263
        %v1267 = vshrl.u32 %v1216, 16
        %v1269 = vrot.slane %v1267, 7
        %v1270 = vshll.u32 %v1216, 16
        %v1272 = vor.u32 %v1269, %v1270
        %v1274 = vshrl.u32 %v1217, 16
        %v1276 = vrot.slane %v1274, 7
        %v1277 = vshll.u32 %v1217, 16
        %v1279 = vor.u32 %v1276, %v1277
        %v1281 = vshrl.u32 %v1218, 16
        %v1283 = vrot.slane %v1281, 7
        %v1284 = vshll.u32 %v1218, 16
        %v1286 = vor.u32 %v1283, %v1284
        %v1288 = vshrl.u32 %v1219, 16
        %v1290 = vrot.slane %v1288, 7
        %v1291 = vshll.u32 %v1219, 16
        %v1293 = vor.u32 %v1290, %v1291
        %v1295 = vshrl.u32 %v1220, 16
        %v1297 = vrot.slane %v1295, 7
        %v1298 = vshll.u32 %v1220, 16
        %v1300 = vor.u32 %v1297, %v1298
        %v1302 = vshrl.u32 %v1221, 16
        %v1304 = vrot.slane %v1302, 7
        %v1305 = vshll.u32 %v1221, 16
        %v1307 = vor.u32 %v1304, %v1305
        %v1309 = vshrl.u32 %v1222, 16
        %v1311 = vrot.slane %v1309, 7
        %v1312 = vshll.u32 %v1222, 16
        %v1314 = vor.u32 %v1311, %v1312
        %v1316 = vshrl.u32 %v1223, 16
        %v1318 = vrot.slane %v1316, 7
        %v1319 = vshll.u32 %v1223, 16
        %v1321 = vor.u32 %v1318, %v1319
        %1322 = vrot.lane.b32.xlu0 %v1230, 64
        %v1323 = vpop.permute.xlu0 %1322
        %1324 = vrot.lane.b32.xlu0 %v1237, 64
        %v1325 = vpop.permute.xlu0 %1324
        %1326 = vrot.lane.b32.xlu0 %v1244, 64
        %v1327 = vpop.permute.xlu0 %1326
        %1328 = vrot.lane.b32.xlu0 %v1251, 64
        %v1329 = vpop.permute.xlu0 %1328
        %1330 = vrot.lane.b32.xlu0 %v1258, 64
        %v1331 = vpop.permute.xlu0 %1330
        %1332 = vrot.lane.b32.xlu0 %v1265, 64
        %v1333 = vpop.permute.xlu0 %1332
        %1334 = vrot.lane.b32.xlu0 %v1272, 64
        %v1335 = vpop.permute.xlu0 %1334
        %1336 = vrot.lane.b32.xlu0 %v1279, 64
        %v1337 = vpop.permute.xlu0 %1336
        %1338 = vrot.lane.b32.xlu0 %v1286, 64
        %v1339 = vpop.permute.xlu0 %1338
        %1340 = vrot.lane.b32.xlu0 %v1293, 64
        %v1341 = vpop.permute.xlu0 %1340
        %1342 = vrot.lane.b32.xlu0 %v1300, 64
        %v1343 = vpop.permute.xlu0 %1342
        %1344 = vrot.lane.b32.xlu0 %v1307, 64
        %v1345 = vpop.permute.xlu0 %1344
        %1346 = vrot.lane.b32.xlu0 %v1314, 64
        %v1347 = vpop.permute.xlu0 %1346
        %1348 = vrot.lane.b32.xlu0 %v1321, 64
        %v1349 = vpop.permute.xlu0 %1348
        %vm1364 = vmand %vm648, %vm337
        %v1365 = vld [vmem:[#allocation2 + $0x4] sm:$0xf]
        %v1366 = vsel %vm1364, %v1323, %v1365
        %1367 = vst [vmem:[#allocation2 + $0x4] sm:$0xf] %v1366
        %v1368 = vld [vmem:[#allocation2 + $0x10] sm:$0xf]
        %v1369 = vsel %vm1364, %v1325, %v1368
        %1370 = vst [vmem:[#allocation2 + $0x10] sm:$0xf] %v1369
        %v1371 = vld [vmem:[#allocation2 + $0x1c] sm:$0xf]
        %v1372 = vsel %vm1364, %v1327, %v1371
        %1373 = vst [vmem:[#allocation2 + $0x1c] sm:$0xf] %v1372
        %v1374 = vld [vmem:[#allocation2 + $0x28] sm:$0xf]
        %v1375 = vsel %vm1364, %v1329, %v1374
        %1376 = vst [vmem:[#allocation2 + $0x28] sm:$0xf] %v1375
        %v1377 = vld [vmem:[#allocation2 + $0x34] sm:$0xf]
        %v1378 = vsel %vm1364, %v1331, %v1377
        %1379 = vst [vmem:[#allocation2 + $0x34] sm:$0xf] %v1378
        %v1380 = vld [vmem:[#allocation2 + $0x40] sm:$0xf]
        %v1381 = vsel %vm1364, %v1333, %v1380
        %1382 = vst [vmem:[#allocation2 + $0x40] sm:$0xf] %v1381
        %v1383 = vld [vmem:[#allocation2 + $0x4c] sm:$0xf]
        %v1384 = vsel %vm1364, %v1335, %v1383
        %1385 = vst [vmem:[#allocation2 + $0x4c] sm:$0xf] %v1384
        %v1386 = vld [vmem:[#allocation2 + $0x64] sm:$0xf]
        %v1387 = vsel %vm1364, %v1337, %v1386
        %1388 = vst [vmem:[#allocation2 + $0x64] sm:$0xf] %v1387
        %v1389 = vld [vmem:[#allocation2 + $0x70] sm:$0xf]
        %v1390 = vsel %vm1364, %v1339, %v1389
        %1391 = vst [vmem:[#allocation2 + $0x70] sm:$0xf] %v1390
        %v1392 = vld [vmem:[#allocation2 + $0x7c] sm:$0xf]
        %v1393 = vsel %vm1364, %v1341, %v1392
        %1394 = vst [vmem:[#allocation2 + $0x7c] sm:$0xf] %v1393
        %v1395 = vld [vmem:[#allocation2 + $0x88] sm:$0xf]
        %v1396 = vsel %vm1364, %v1343, %v1395
        %1397 = vst [vmem:[#allocation2 + $0x88] sm:$0xf] %v1396
        %v1398 = vld [vmem:[#allocation2 + $0x94] sm:$0xf]
        %v1399 = vsel %vm1364, %v1345, %v1398
        %1400 = vst [vmem:[#allocation2 + $0x94] sm:$0xf] %v1399
        %v1401 = vld [vmem:[#allocation2 + $0xa0] sm:$0xf]
        %v1402 = vsel %vm1364, %v1347, %v1401
        %1403 = vst [vmem:[#allocation2 + $0xa0] sm:$0xf] %v1402
        %v1404 = vld [vmem:[#allocation2 + $0xac] sm:$0xf]
        %v1405 = vsel %vm1364, %v1349, %v1404
        %1406 = vst [vmem:[#allocation2 + $0xac] sm:$0xf] %v1405
        %v1407 = vld [vmem:[%s1209] sm:$0xf]
        %v1408 = vld [vmem:[%s1209 + $0x4] sm:$0xf]
        %v1409 = vld [vmem:[%s1209 + $0x8] sm:$0xf]
        %v1410 = vld [vmem:[%s1209 + $0xc] sm:$0xf]
        %v1411 = vld [vmem:[%s1209 + $0x10] sm:$0xf]
        %v1412 = vld [vmem:[%s1209 + $0x14] sm:$0xf]
        %v1413 = vld [vmem:[%s1209 + $0x18] sm:$0xf]
        %v1414 = vld [vmem:[%s1209 + $0x20] sm:$0xf]
        %v1415 = vld [vmem:[%s1209 + $0x24] sm:$0xf]
        %v1416 = vld [vmem:[%s1209 + $0x28] sm:$0xf]
        %v1417 = vld [vmem:[%s1209 + $0x2c] sm:$0xf]
        %v1418 = vld [vmem:[%s1209 + $0x30] sm:$0xf]
        %v1419 = vld [vmem:[%s1209 + $0x34] sm:$0xf]
        %v1420 = vld [vmem:[%s1209 + $0x38] sm:$0xf]
        %1435 = vrot.lane.b32.xlu0 %v1407, 96
        %v1436 = vpop.permute.xlu0 %1435
        %1437 = vrot.lane.b32.xlu0 %v1408, 96
        %v1438 = vpop.permute.xlu0 %1437
        %1439 = vrot.lane.b32.xlu0 %v1409, 96
        %v1440 = vpop.permute.xlu0 %1439
        %1441 = vrot.lane.b32.xlu0 %v1410, 96
        %v1442 = vpop.permute.xlu0 %1441
        %1443 = vrot.lane.b32.xlu0 %v1411, 96
        %v1444 = vpop.permute.xlu0 %1443
        %1445 = vrot.lane.b32.xlu0 %v1412, 96
        %v1446 = vpop.permute.xlu0 %1445
        %1447 = vrot.lane.b32.xlu0 %v1413, 96
        %v1448 = vpop.permute.xlu0 %1447
        %1449 = vrot.lane.b32.xlu0 %v1414, 96
        %v1450 = vpop.permute.xlu0 %1449
        %1451 = vrot.lane.b32.xlu0 %v1415, 96
        %v1452 = vpop.permute.xlu0 %1451
        %1453 = vrot.lane.b32.xlu0 %v1416, 96
        %v1454 = vpop.permute.xlu0 %1453
        %1455 = vrot.lane.b32.xlu0 %v1417, 96
        %v1456 = vpop.permute.xlu0 %1455
        %1457 = vrot.lane.b32.xlu0 %v1418, 96
        %v1458 = vpop.permute.xlu0 %1457
        %1459 = vrot.lane.b32.xlu0 %v1419, 96
        %v1460 = vpop.permute.xlu0 %1459
        %1461 = vrot.lane.b32.xlu0 %v1420, 96
        %v1462 = vpop.permute.xlu0 %1461
        %vm1477 = vcmask 1044224
        %1478 = vst.msk [vmem:[#allocation2 + $0x4] sm:$0xf] %vm1477, %v1436
        %1479 = vst.msk [vmem:[#allocation2 + $0x10] sm:$0xf] %vm1477, %v1438
        %1480 = vst.msk [vmem:[#allocation2 + $0x1c] sm:$0xf] %vm1477, %v1440
        %1481 = vst.msk [vmem:[#allocation2 + $0x28] sm:$0xf] %vm1477, %v1442
        %1482 = vst.msk [vmem:[#allocation2 + $0x34] sm:$0xf] %vm1477, %v1444
        %1483 = vst.msk [vmem:[#allocation2 + $0x40] sm:$0xf] %vm1477, %v1446
        %1484 = vst.msk [vmem:[#allocation2 + $0x4c] sm:$0xf] %vm1477, %v1448
        %1485 = vst.msk [vmem:[#allocation2 + $0x64] sm:$0xf] %vm1477, %v1450
        %1486 = vst.msk [vmem:[#allocation2 + $0x70] sm:$0xf] %vm1477, %v1452
        %1487 = vst.msk [vmem:[#allocation2 + $0x7c] sm:$0xf] %vm1477, %v1454
        %1488 = vst.msk [vmem:[#allocation2 + $0x88] sm:$0xf] %vm1477, %v1456
        %1489 = vst.msk [vmem:[#allocation2 + $0x94] sm:$0xf] %vm1477, %v1458
        %1490 = vst.msk [vmem:[#allocation2 + $0xa0] sm:$0xf] %vm1477, %v1460
        %1491 = vst.msk [vmem:[#allocation2 + $0xac] sm:$0xf] %vm1477, %v1462
        %v1492 = vld [vmem:[%s1209] sm:$0xf]
        %v1493 = vld [vmem:[%s1209 + $0x4] sm:$0xf]
        %v1494 = vld [vmem:[%s1209 + $0x8] sm:$0xf]
        %v1495 = vld [vmem:[%s1209 + $0xc] sm:$0xf]
        %v1496 = vld [vmem:[%s1209 + $0x10] sm:$0xf]
        %v1497 = vld [vmem:[%s1209 + $0x14] sm:$0xf]
        %v1498 = vld [vmem:[%s1209 + $0x18] sm:$0xf]
        %v1499 = vld [vmem:[%s1209 + $0x20] sm:$0xf]
        %v1500 = vld [vmem:[%s1209 + $0x24] sm:$0xf]
        %v1501 = vld [vmem:[%s1209 + $0x28] sm:$0xf]
        %v1502 = vld [vmem:[%s1209 + $0x2c] sm:$0xf]
        %v1503 = vld [vmem:[%s1209 + $0x30] sm:$0xf]
        %v1504 = vld [vmem:[%s1209 + $0x34] sm:$0xf]
        %v1505 = vld [vmem:[%s1209 + $0x38] sm:$0xf]
        %v1507 = vshrl.u32 %v1492, 16
        %v1509 = vrot.slane %v1507, 4
        %v1510 = vshll.u32 %v1492, 16
        %v1512 = vrot.slane %v1510, 5
        %v1513 = vor.u32 %v1509, %v1512
        %v1514 = vrot.slane %v1513, 4
        %v1516 = vshrl.u32 %v1493, 16
        %v1518 = vrot.slane %v1516, 4
        %v1519 = vshll.u32 %v1493, 16
        %v1521 = vrot.slane %v1519, 5
        %v1522 = vor.u32 %v1518, %v1521
        %v1523 = vrot.slane %v1522, 4
        %v1525 = vshrl.u32 %v1494, 16
        %v1527 = vrot.slane %v1525, 4
        %v1528 = vshll.u32 %v1494, 16
        %v1530 = vrot.slane %v1528, 5
        %v1531 = vor.u32 %v1527, %v1530
        %v1532 = vrot.slane %v1531, 4
        %v1534 = vshrl.u32 %v1495, 16
        %v1536 = vrot.slane %v1534, 4
        %v1537 = vshll.u32 %v1495, 16
        %v1539 = vrot.slane %v1537, 5
        %v1540 = vor.u32 %v1536, %v1539
        %v1541 = vrot.slane %v1540, 4
        %v1543 = vshrl.u32 %v1496, 16
        %v1545 = vrot.slane %v1543, 4
        %v1546 = vshll.u32 %v1496, 16
        %v1548 = vrot.slane %v1546, 5
        %v1549 = vor.u32 %v1545, %v1548
        %v1550 = vrot.slane %v1549, 4
        %v1552 = vshrl.u32 %v1497, 16
        %v1554 = vrot.slane %v1552, 4
        %v1555 = vshll.u32 %v1497, 16
        %v1557 = vrot.slane %v1555, 5
        %v1558 = vor.u32 %v1554, %v1557
        %v1559 = vrot.slane %v1558, 4
        %v1561 = vshrl.u32 %v1498, 16
        %v1563 = vrot.slane %v1561, 4
        %v1564 = vshll.u32 %v1498, 16
        %v1566 = vrot.slane %v1564, 5
        %v1567 = vor.u32 %v1563, %v1566
        %v1568 = vrot.slane %v1567, 4
        %v1570 = vshrl.u32 %v1499, 16
        %v1572 = vrot.slane %v1570, 4
        %v1573 = vshll.u32 %v1499, 16
        %v1575 = vrot.slane %v1573, 5
        %v1576 = vor.u32 %v1572, %v1575
        %v1577 = vrot.slane %v1576, 4
        %v1579 = vshrl.u32 %v1500, 16
        %v1581 = vrot.slane %v1579, 4
        %v1582 = vshll.u32 %v1500, 16
        %v1584 = vrot.slane %v1582, 5
        %v1585 = vor.u32 %v1581, %v1584
        %v1586 = vrot.slane %v1585, 4
        %v1588 = vshrl.u32 %v1501, 16
        %v1590 = vrot.slane %v1588, 4
        %v1591 = vshll.u32 %v1501, 16
        %v1593 = vrot.slane %v1591, 5
        %v1594 = vor.u32 %v1590, %v1593
        %v1595 = vrot.slane %v1594, 4
        %v1597 = vshrl.u32 %v1502, 16
        %v1599 = vrot.slane %v1597, 4
        %v1600 = vshll.u32 %v1502, 16
        %v1602 = vrot.slane %v1600, 5
        %v1603 = vor.u32 %v1599, %v1602
        %v1604 = vrot.slane %v1603, 4
        %v1606 = vshrl.u32 %v1503, 16
        %v1608 = vrot.slane %v1606, 4
        %v1609 = vshll.u32 %v1503, 16
        %v1611 = vrot.slane %v1609, 5
        %v1612 = vor.u32 %v1608, %v1611
        %v1613 = vrot.slane %v1612, 4
        %v1615 = vshrl.u32 %v1504, 16
        %v1617 = vrot.slane %v1615, 4
        %v1618 = vshll.u32 %v1504, 16
        %v1620 = vrot.slane %v1618, 5
        %v1621 = vor.u32 %v1617, %v1620
        %v1622 = vrot.slane %v1621, 4
        %v1624 = vshrl.u32 %v1505, 16
        %v1626 = vrot.slane %v1624, 4
        %v1627 = vshll.u32 %v1505, 16
        %v1629 = vrot.slane %v1627, 5
        %v1630 = vor.u32 %v1626, %v1629
        %v1631 = vrot.slane %v1630, 4
        %vm1646 = vmand %vm336, %vm649
        %v1647 = vld [vmem:[#allocation2 + $0x8] sm:$0xf]
        %v1648 = vsel %vm1646, %v1514, %v1647
        %1649 = vst [vmem:[#allocation2 + $0x8] sm:$0xf] %v1648
        %v1650 = vld [vmem:[#allocation2 + $0x14] sm:$0xf]
        %v1651 = vsel %vm1646, %v1523, %v1650
        %1652 = vst [vmem:[#allocation2 + $0x14] sm:$0xf] %v1651
        %v1653 = vld [vmem:[#allocation2 + $0x20] sm:$0xf]
        %v1654 = vsel %vm1646, %v1532, %v1653
        %1655 = vst [vmem:[#allocation2 + $0x20] sm:$0xf] %v1654
        %v1656 = vld [vmem:[#allocation2 + $0x2c] sm:$0xf]
        %v1657 = vsel %vm1646, %v1541, %v1656
        %1658 = vst [vmem:[#allocation2 + $0x2c] sm:$0xf] %v1657
        %v1659 = vld [vmem:[#allocation2 + $0x38] sm:$0xf]
        %v1660 = vsel %vm1646, %v1550, %v1659
        %1661 = vst [vmem:[#allocation2 + $0x38] sm:$0xf] %v1660
        %v1662 = vld [vmem:[#allocation2 + $0x44] sm:$0xf]
        %v1663 = vsel %vm1646, %v1559, %v1662
        %1664 = vst [vmem:[#allocation2 + $0x44] sm:$0xf] %v1663
        %v1665 = vld [vmem:[#allocation2 + $0x50] sm:$0xf]
        %v1666 = vsel %vm1646, %v1568, %v1665
        %1667 = vst [vmem:[#allocation2 + $0x50] sm:$0xf] %v1666
        %v1668 = vld [vmem:[#allocation2 + $0x68] sm:$0xf]
        %v1669 = vsel %vm1646, %v1577, %v1668
        %1670 = vst [vmem:[#allocation2 + $0x68] sm:$0xf] %v1669
        %v1671 = vld [vmem:[#allocation2 + $0x74] sm:$0xf]
        %v1672 = vsel %vm1646, %v1586, %v1671
        %1673 = vst [vmem:[#allocation2 + $0x74] sm:$0xf] %v1672
        %v1674 = vld [vmem:[#allocation2 + $0x80] sm:$0xf]
        %v1675 = vsel %vm1646, %v1595, %v1674
        %1676 = vst [vmem:[#allocation2 + $0x80] sm:$0xf] %v1675
        %v1677 = vld [vmem:[#allocation2 + $0x8c] sm:$0xf]
        %v1678 = vsel %vm1646, %v1604, %v1677
        %1679 = vst [vmem:[#allocation2 + $0x8c] sm:$0xf] %v1678
        %v1680 = vld [vmem:[#allocation2 + $0x98] sm:$0xf]
        %v1681 = vsel %vm1646, %v1613, %v1680
        %1682 = vst [vmem:[#allocation2 + $0x98] sm:$0xf] %v1681
        %v1683 = vld [vmem:[#allocation2 + $0xa4] sm:$0xf]
        %v1684 = vsel %vm1646, %v1622, %v1683
        %1685 = vst [vmem:[#allocation2 + $0xa4] sm:$0xf] %v1684
        %v1686 = vld [vmem:[#allocation2 + $0xb0] sm:$0xf]
        %v1687 = vsel %vm1646, %v1631, %v1686
        %1688 = vst [vmem:[#allocation2 + $0xb0] sm:$0xf] %v1687
        %v1689 = vld [vmem:[#allocation2] sm:$0xff]
        %v1690 = vld [vmem:[#allocation2 + $0x8] sm:$0xf]
        %v1691 = vld [vmem:[#allocation2 + $0xc] sm:$0xff]
        %v1692 = vld [vmem:[#allocation2 + $0x14] sm:$0xf]
        %v1693 = vld [vmem:[#allocation2 + $0x18] sm:$0xff]
        %v1694 = vld [vmem:[#allocation2 + $0x20] sm:$0xf]
        %v1695 = vld [vmem:[#allocation2 + $0x24] sm:$0xff]
        %v1696 = vld [vmem:[#allocation2 + $0x2c] sm:$0xf]
        %v1697 = vld [vmem:[#allocation2 + $0x30] sm:$0xff]
        %v1698 = vld [vmem:[#allocation2 + $0x38] sm:$0xf]
        %v1699 = vld [vmem:[#allocation2 + $0x3c] sm:$0xff]
        %v1700 = vld [vmem:[#allocation2 + $0x44] sm:$0xf]
        %v1701 = vld [vmem:[#allocation2 + $0x48] sm:$0xff]
        %v1702 = vld [vmem:[#allocation2 + $0x50] sm:$0xf]
        %v1703 = vld [vmem:[#allocation2 + $0x54] sm:$0xff]
        %v1704 = vld [vmem:[#allocation2 + $0x5c] sm:$0xf]
        %v1705 = vld [vmem:[#allocation2 + $0x60] sm:$0xff]
        %v1706 = vld [vmem:[#allocation2 + $0x68] sm:$0xf]
        %v1707 = vld [vmem:[#allocation2 + $0x6c] sm:$0xff]
        %v1708 = vld [vmem:[#allocation2 + $0x74] sm:$0xf]
        %v1709 = vld [vmem:[#allocation2 + $0x78] sm:$0xff]
        %v1710 = vld [vmem:[#allocation2 + $0x80] sm:$0xf]
        %v1711 = vld [vmem:[#allocation2 + $0x84] sm:$0xff]
        %v1712 = vld [vmem:[#allocation2 + $0x8c] sm:$0xf]
        %v1713 = vld [vmem:[#allocation2 + $0x90] sm:$0xff]
        %v1714 = vld [vmem:[#allocation2 + $0x98] sm:$0xf]
        %v1715 = vld [vmem:[#allocation2 + $0x9c] sm:$0xff]
        %v1716 = vld [vmem:[#allocation2 + $0xa4] sm:$0xf]
        %v1717 = vld [vmem:[#allocation2 + $0xa8] sm:$0xff]
        %v1718 = vld [vmem:[#allocation2 + $0xb0] sm:$0xf]
        %v1719 = vld [vmem:[#allocation2 + $0xb4] sm:$0xff]
        %v1720 = vld [vmem:[#allocation2 + $0xbc] sm:$0xf]
        %v1721 = vld [vmem:[%s1] sm:$0xf]
        %v1722 = vld [vmem:[%s1 + $0x4] sm:$0xf]
        %v1723 = vld [vmem:[%s1 + $0x8] sm:$0xf]
        %v1724 = vld [vmem:[%s1 + $0xc] sm:$0xf]
        %v1725 = vld [vmem:[%s1 + $0x10] sm:$0xf]
        %v1726 = vld [vmem:[%s1 + $0x14] sm:$0xf]
        %v1727 = vld [vmem:[%s1 + $0x18] sm:$0xf]
        %v1728 = vld [vmem:[%s1 + $0x1c] sm:$0xf]
        %v1729 = vld [vmem:[%s1 + $0x20] sm:$0xf]
        %v1730 = vld [vmem:[%s1 + $0x24] sm:$0xf]
        %v1731 = vld [vmem:[%s1 + $0x28] sm:$0xf]
        %v1732 = vld [vmem:[%s1 + $0x2c] sm:$0xf]
        %v1733 = vld [vmem:[%s1 + $0x30] sm:$0xf]
        %v1734 = vld [vmem:[%s1 + $0x34] sm:$0xf]
        %v1735 = vld [vmem:[%s1 + $0x38] sm:$0xf]
        %v1736 = vld [vmem:[%s1 + $0x3c] sm:$0xf]
        %v1737 = vld [vmem:[%s1 + $0x40] sm:$0xf]
        %v1738 = vld [vmem:[%s1 + $0x44] sm:$0xf]
        %v1739 = vld [vmem:[%s1 + $0x48] sm:$0xf]
        %v1740 = vld [vmem:[%s1 + $0x4c] sm:$0xf]
        %v1741 = vld [vmem:[%s1 + $0x50] sm:$0xf]
        %v1742 = vld [vmem:[%s1 + $0x54] sm:$0xf]
        %v1743 = vld [vmem:[%s1 + $0x58] sm:$0xf]
        %v1744 = vld [vmem:[%s1 + $0x5c] sm:$0xf]
        %v1745 = vld [vmem:[%s1 + $0x60] sm:$0xf]
        %v1746 = vld [vmem:[%s1 + $0x64] sm:$0xf]
        %v1747 = vld [vmem:[%s1 + $0x68] sm:$0xf]
        %v1748 = vld [vmem:[%s1 + $0x6c] sm:$0xf]
        %v1749 = vld [vmem:[%s1 + $0x70] sm:$0xf]
        %v1750 = vld [vmem:[%s1 + $0x74] sm:$0xf]
        %v1751 = vld [vmem:[%s1 + $0x78] sm:$0xf]
        %v1752 = vld [vmem:[%s1 + $0x7c] sm:$0xf]
        %v1753 = vld [vmem:[%s1 + $0x80] sm:$0xf]
        %v1754 = vld [vmem:[%s1 + $0x84] sm:$0xf]
        %v1755 = vld [vmem:[%s1 + $0x88] sm:$0xf]
        %v1756 = vld [vmem:[%s1 + $0x8c] sm:$0xf]
        %v1757 = vld [vmem:[%s2] sm:$0x1]
        %v1759 = vperm.slane %v1757, 0
        %v1793 = vunpack.c.l.b16 %v1689
        %v1794 = vunpack.c.h.b16 %v1689
        %v1795 = vunpack.c.l.b16 %v1690
        %v1796 = vunpack.c.l.b16 %v1691
        %v1797 = vunpack.c.h.b16 %v1691
        %v1798 = vunpack.c.l.b16 %v1692
        %v1799 = vunpack.c.l.b16 %v1693
        %v1800 = vunpack.c.h.b16 %v1693
        %v1801 = vunpack.c.l.b16 %v1694
        %v1802 = vunpack.c.l.b16 %v1695
        %v1803 = vunpack.c.h.b16 %v1695
        %v1804 = vunpack.c.l.b16 %v1696
        %v1805 = vunpack.c.l.b16 %v1697
        %v1806 = vunpack.c.h.b16 %v1697
        %v1807 = vunpack.c.l.b16 %v1698
        %v1808 = vunpack.c.l.b16 %v1699
        %v1809 = vunpack.c.h.b16 %v1699
        %v1810 = vunpack.c.l.b16 %v1700
        %v1811 = vunpack.c.l.b16 %v1701
        %v1812 = vunpack.c.h.b16 %v1701
        %v1813 = vunpack.c.l.b16 %v1702
        %v1814 = vunpack.c.l.b16 %v1703
        %v1815 = vunpack.c.h.b16 %v1703
        %v1816 = vunpack.c.l.b16 %v1704
        %v1817 = vunpack.c.l.b16 %v1705
        %v1818 = vunpack.c.h.b16 %v1705
        %v1819 = vunpack.c.l.b16 %v1706
        %v1820 = vunpack.c.l.b16 %v1707
        %v1821 = vunpack.c.h.b16 %v1707
        %v1822 = vunpack.c.l.b16 %v1708
        %v1823 = vunpack.c.l.b16 %v1709
        %v1824 = vunpack.c.h.b16 %v1709
        %v1825 = vunpack.c.l.b16 %v1710
        %v1826 = vunpack.c.l.b16 %v1711
        %v1827 = vunpack.c.h.b16 %v1711
        %v1828 = vunpack.c.l.b16 %v1712
        %v1829 = vunpack.c.l.b16 %v1713
        %v1830 = vunpack.c.h.b16 %v1713
        %v1831 = vunpack.c.l.b16 %v1714
        %v1832 = vunpack.c.l.b16 %v1715
        %v1833 = vunpack.c.h.b16 %v1715
        %v1834 = vunpack.c.l.b16 %v1716
        %v1835 = vunpack.c.l.b16 %v1717
        %v1836 = vunpack.c.h.b16 %v1717
        %v1837 = vunpack.c.l.b16 %v1718
        %v1838 = vunpack.c.l.b16 %v1719
        %v1839 = vunpack.c.h.b16 %v1719
        %v1840 = vunpack.c.l.b16 %v1720
        %v1841 = vpack.c.b16 %v1796, %v1793
        %v1842 = vpack.c.b16 %v1797, %v1794
        %v1843 = vpack.c.b16 %v1798, %v1795
        %v1844 = vpack.c.b16 %v1802, %v1799
        %v1845 = vpack.c.b16 %v1803, %v1800
        %v1846 = vpack.c.b16 %v1804, %v1801
        %v1847 = vpack.c.b16 %v1808, %v1805
        %v1848 = vpack.c.b16 %v1809, %v1806
        %v1849 = vpack.c.b16 %v1810, %v1807
        %v1850 = vpack.c.b16 %v1814, %v1811
        %v1851 = vpack.c.b16 %v1815, %v1812
        %v1852 = vpack.c.b16 %v1816, %v1813
        %v1853 = vpack.c.b16 %v1820, %v1817
        %v1854 = vpack.c.b16 %v1821, %v1818
        %v1855 = vpack.c.b16 %v1822, %v1819
        %v1856 = vpack.c.b16 %v1826, %v1823
        %v1857 = vpack.c.b16 %v1827, %v1824
        %v1858 = vpack.c.b16 %v1828, %v1825
        %v1859 = vpack.c.b16 %v1832, %v1829
        %v1860 = vpack.c.b16 %v1833, %v1830
        %v1861 = vpack.c.b16 %v1834, %v1831
        %v1862 = vpack.c.b16 %v1838, %v1835
        %v1863 = vpack.c.b16 %v1839, %v1836
        %v1864 = vpack.c.b16 %v1840, %v1837
        %v1917 = vunpack.c.l.b16 %v1721
        %v1918 = vunpack.c.l.b16 %v1722
        %v1919 = vunpack.c.l.b16 %v1723
        %v1920 = vunpack.c.l.b16 %v1724
        %v1921 = vunpack.c.l.b16 %v1725
        %v1922 = vunpack.c.l.b16 %v1726
        %v1923 = vunpack.c.l.b16 %v1727
        %v1924 = vunpack.c.l.b16 %v1728
        %v1925 = vunpack.c.l.b16 %v1729
        %v1926 = vunpack.c.l.b16 %v1730
        %v1927 = vunpack.c.l.b16 %v1731
        %v1928 = vunpack.c.l.b16 %v1732
        %v1929 = vunpack.c.l.b16 %v1733
        %v1930 = vunpack.c.l.b16 %v1734
        %v1931 = vunpack.c.l.b16 %v1735
        %v1932 = vunpack.c.l.b16 %v1736
        %v1933 = vunpack.c.l.b16 %v1737
        %v1934 = vunpack.c.l.b16 %v1738
        %v1935 = vunpack.c.l.b16 %v1739
        %v1936 = vunpack.c.l.b16 %v1740
        %v1937 = vunpack.c.l.b16 %v1741
        %v1938 = vunpack.c.l.b16 %v1742
        %v1939 = vunpack.c.l.b16 %v1743
        %v1940 = vunpack.c.l.b16 %v1744
        %v1941 = vunpack.c.l.b16 %v1745
        %v1942 = vunpack.c.l.b16 %v1746
        %v1943 = vunpack.c.l.b16 %v1747
        %v1944 = vunpack.c.l.b16 %v1748
        %v1945 = vunpack.c.l.b16 %v1749
        %v1946 = vunpack.c.l.b16 %v1750
        %v1947 = vunpack.c.l.b16 %v1751
        %v1948 = vunpack.c.l.b16 %v1752
        %v1949 = vunpack.c.l.b16 %v1753
        %v1950 = vunpack.c.l.b16 %v1754
        %v1951 = vunpack.c.l.b16 %v1755
        %v1952 = vunpack.c.l.b16 %v1756
        %v1953 = vpack.c.b16 %v1918, %v1917
        %v1954 = vpack.c.b16 %v1920, %v1919
        %v1955 = vpack.c.b16 %v1922, %v1921
        %v1956 = vpack.c.b16 %v1924, %v1923
        %v1957 = vpack.c.b16 %v1926, %v1925
        %v1958 = vpack.c.b16 %v1928, %v1927
        %v1959 = vpack.c.b16 %v1930, %v1929
        %v1960 = vpack.c.b16 %v1932, %v1931
        %v1961 = vpack.c.b16 %v1934, %v1933
        %v1962 = vpack.c.b16 %v1936, %v1935
        %v1963 = vpack.c.b16 %v1938, %v1937
        %v1964 = vpack.c.b16 %v1940, %v1939
        %v1965 = vpack.c.b16 %v1942, %v1941
        %v1966 = vpack.c.b16 %v1944, %v1943
        %v1967 = vpack.c.b16 %v1946, %v1945
        %v1968 = vpack.c.b16 %v1948, %v1947
        %v1969 = vpack.c.b16 %v1950, %v1949
        %v1970 = vpack.c.b16 %v1952, %v1951
        %vm1989 = vcmask 261120
        %v1991 = vsel %vm1989, %v1843, 0
        %v1994 = vsel %vm1989, %v1846, 0
        %v1997 = vsel %vm1989, %v1849, 0
        %v2000 = vsel %vm1989, %v1852, 0
        %v2003 = vsel %vm1989, %v1855, 0
        %v2006 = vsel %vm1989, %v1858, 0
        %v2009 = vsel %vm1989, %v1861, 0
        %v2012 = vsel %vm1989, %v1864, 0
        %2014 = vmatpush.bf16.msra.mxu0 %v1960
        %2015 = vmatpush.bf16.msra.mxu0 %v1959
        %2016 = vmatpush.bf16.msra.mxu0 %v1958
        %2017 = vmatpush.bf16.msra.mxu0 %v1957
        %2018 = vmatpush.bf16.msra.mxu0 %v1956
        %2019 = vmatpush.bf16.msra.mxu0 %v1955
        %2020 = vmatpush.bf16.msra.mxu0 %v1954
        %2021 = vmatpush.bf16.msra.mxu0 %v1953
        %2022 = vmatmul.bf16.gmra.mxu0 %v1841
        %v2023 = vpop.f32.mrf.mxu0
        %v2024 = vadd.f32 %v1759, %v2023
        %v2025 = vpop.f32.mrf.mxu0
        %v2026 = vadd.f32 %v1759, %v2025
        %2027 = vmatmul.bf16.gmra.mxu0 %v1844
        %v2028 = vpop.f32.mrf.mxu0
        %v2029 = vadd.f32 %v1759, %v2028
        %v2030 = vpop.f32.mrf.mxu0
        %v2031 = vadd.f32 %v1759, %v2030
        %2032 = vmatmul.bf16.gmra.mxu0 %v1847
        %v2033 = vpop.f32.mrf.mxu0
        %v2034 = vadd.f32 %v1759, %v2033
        %v2035 = vpop.f32.mrf.mxu0
        %v2036 = vadd.f32 %v1759, %v2035
        %2037 = vmatmul.bf16.gmra.mxu0 %v1850
        %v2038 = vpop.f32.mrf.mxu0
        %v2039 = vadd.f32 %v1759, %v2038
        %v2040 = vpop.f32.mrf.mxu0
        %v2041 = vadd.f32 %v1759, %v2040
        %2042 = vmatmul.bf16.gmra.mxu0 %v1853
        %v2043 = vpop.f32.mrf.mxu0
        %v2044 = vadd.f32 %v1759, %v2043
        %v2045 = vpop.f32.mrf.mxu0
        %v2046 = vadd.f32 %v1759, %v2045
        %2047 = vmatmul.bf16.gmra.mxu0 %v1856
        %v2048 = vpop.f32.mrf.mxu0
        %v2049 = vadd.f32 %v1759, %v2048
        %v2050 = vpop.f32.mrf.mxu0
        %v2051 = vadd.f32 %v1759, %v2050
        %2052 = vmatmul.bf16.gmra.mxu0 %v1859
        %v2053 = vpop.f32.mrf.mxu0
        %v2054 = vadd.f32 %v1759, %v2053
        %v2055 = vpop.f32.mrf.mxu0
        %v2056 = vadd.f32 %v1759, %v2055
        %2057 = vmatmul.bf16.gmra.mxu0 %v1862
        %v2058 = vpop.f32.mrf.mxu0
        %v2059 = vadd.f32 %v1759, %v2058
        %v2060 = vpop.f32.mrf.mxu0
        %v2061 = vadd.f32 %v1759, %v2060
        %2062 = vdwg.mxu0
        %2063 = vmatpush.bf16.msra.mxu0 %v1968
        %2064 = vmatpush.bf16.msra.mxu0 %v1967
        %2065 = vmatpush.bf16.msra.mxu0 %v1966
        %2066 = vmatpush.bf16.msra.mxu0 %v1965
        %2067 = vmatpush.bf16.msra.mxu0 %v1964
        %2068 = vmatpush.bf16.msra.mxu0 %v1963
        %2069 = vmatpush.bf16.msra.mxu0 %v1962
        %2070 = vmatpush.bf16.msra.mxu0 %v1961
        %2071 = vmatmul.bf16.gmra.mxu0 %v1842
        %v2072 = vpop.f32.mrf.mxu0
        %v2073 = vadd.f32 %v2024, %v2072
        %v2074 = vpop.f32.mrf.mxu0
        %v2075 = vadd.f32 %v2026, %v2074
        %2076 = vmatmul.bf16.gmra.mxu0 %v1845
        %v2077 = vpop.f32.mrf.mxu0
        %v2078 = vadd.f32 %v2029, %v2077
        %v2079 = vpop.f32.mrf.mxu0
        %v2080 = vadd.f32 %v2031, %v2079
        %2081 = vmatmul.bf16.gmra.mxu0 %v1848
        %v2082 = vpop.f32.mrf.mxu0
        %v2083 = vadd.f32 %v2034, %v2082
        %v2084 = vpop.f32.mrf.mxu0
        %v2085 = vadd.f32 %v2036, %v2084
        %2086 = vmatmul.bf16.gmra.mxu0 %v1851
        %v2087 = vpop.f32.mrf.mxu0
        %v2088 = vadd.f32 %v2039, %v2087
        %v2089 = vpop.f32.mrf.mxu0
        %v2090 = vadd.f32 %v2041, %v2089
        %2091 = vmatmul.bf16.gmra.mxu0 %v1854
        %v2092 = vpop.f32.mrf.mxu0
        %v2093 = vadd.f32 %v2044, %v2092
        %v2094 = vpop.f32.mrf.mxu0
        %v2095 = vadd.f32 %v2046, %v2094
        %2096 = vmatmul.bf16.gmra.mxu0 %v1857
        %v2097 = vpop.f32.mrf.mxu0
        %v2098 = vadd.f32 %v2049, %v2097
        %v2099 = vpop.f32.mrf.mxu0
        %v2100 = vadd.f32 %v2051, %v2099
        %2101 = vmatmul.bf16.gmra.mxu0 %v1860
        %v2102 = vpop.f32.mrf.mxu0
        %v2103 = vadd.f32 %v2054, %v2102
        %v2104 = vpop.f32.mrf.mxu0
        %v2105 = vadd.f32 %v2056, %v2104
        %2106 = vmatmul.bf16.gmra.mxu0 %v1863
        %v2107 = vpop.f32.mrf.mxu0
        %v2108 = vadd.f32 %v2059, %v2107
        %v2109 = vpop.f32.mrf.mxu0
        %v2110 = vadd.f32 %v2061, %v2109
        %2111 = vdwg.mxu0
        %2112 = vmatpush.bf16.msra.mxu0 0
        %2113 = vmatpush.bf16.msra.mxu0 0
        %2114 = vmatpush.bf16.msra.mxu0 0
        %2115 = vmatpush.bf16.msra.mxu0 0
        %2116 = vmatpush.bf16.msra.mxu0 0
        %2117 = vmatpush.bf16.msra.mxu0 0
        %2118 = vmatpush.bf16.msra.mxu0 %v1970
        %2119 = vmatpush.bf16.msra.mxu0 %v1969
        %2120 = vmatmul.bf16.gmra.mxu0 %v1991
        %v2121 = vpop.f32.mrf.mxu0
        %v2122 = vadd.f32 %v2073, %v2121
        %v2123 = vpop.f32.mrf.mxu0
        %v2124 = vadd.f32 %v2075, %v2123
        %2125 = vmatmul.bf16.gmra.mxu0 %v1994
        %v2126 = vpop.f32.mrf.mxu0
        %v2127 = vadd.f32 %v2078, %v2126
        %v2128 = vpop.f32.mrf.mxu0
        %v2129 = vadd.f32 %v2080, %v2128
        %2130 = vmatmul.bf16.gmra.mxu0 %v1997
        %v2131 = vpop.f32.mrf.mxu0
        %v2132 = vadd.f32 %v2083, %v2131
        %v2133 = vpop.f32.mrf.mxu0
        %v2134 = vadd.f32 %v2085, %v2133
        %2135 = vmatmul.bf16.gmra.mxu0 %v2000
        %v2136 = vpop.f32.mrf.mxu0
        %v2137 = vadd.f32 %v2088, %v2136
        %v2138 = vpop.f32.mrf.mxu0
        %v2139 = vadd.f32 %v2090, %v2138
        %2140 = vmatmul.bf16.gmra.mxu0 %v2003
        %v2141 = vpop.f32.mrf.mxu0
        %v2142 = vadd.f32 %v2093, %v2141
        %v2143 = vpop.f32.mrf.mxu0
        %v2144 = vadd.f32 %v2095, %v2143
        %2145 = vmatmul.bf16.gmra.mxu0 %v2006
        %v2146 = vpop.f32.mrf.mxu0
        %v2147 = vadd.f32 %v2098, %v2146
        %v2148 = vpop.f32.mrf.mxu0
        %v2149 = vadd.f32 %v2100, %v2148
        %2150 = vmatmul.bf16.gmra.mxu0 %v2009
        %v2151 = vpop.f32.mrf.mxu0
        %v2152 = vadd.f32 %v2103, %v2151
        %v2153 = vpop.f32.mrf.mxu0
        %v2154 = vadd.f32 %v2105, %v2153
        %2155 = vmatmul.bf16.gmra.mxu0 %v2012
        %v2156 = vpop.f32.mrf.mxu0
        %v2157 = vadd.f32 %v2108, %v2156
        %v2158 = vpop.f32.mrf.mxu0
        %v2159 = vadd.f32 %v2110, %v2158
        %2160 = vdwg.mxu0
        %v2161 = vxor.u32 %v2122, 2147483648
        %v2162 = vxor.u32 %v2124, 2147483648
        %v2163 = vxor.u32 %v2127, 2147483648
        %v2164 = vxor.u32 %v2129, 2147483648
        %v2165 = vxor.u32 %v2132, 2147483648
        %v2166 = vxor.u32 %v2134, 2147483648
        %v2167 = vxor.u32 %v2137, 2147483648
        %v2168 = vxor.u32 %v2139, 2147483648
        %v2169 = vxor.u32 %v2142, 2147483648
        %v2170 = vxor.u32 %v2144, 2147483648
        %v2171 = vxor.u32 %v2147, 2147483648
        %v2172 = vxor.u32 %v2149, 2147483648
        %v2173 = vxor.u32 %v2152, 2147483648
        %v2174 = vxor.u32 %v2154, 2147483648
        %v2175 = vxor.u32 %v2157, 2147483648
        %v2176 = vxor.u32 %v2159, 2147483648
        %v2177 = vmul.f32 %v2161, 1.442695
        %v2178 = vpow.pop %v2177
        %v2179 = vmul.f32 %v2162, 1.442695
        %v2180 = vpow.pop %v2179
        %v2181 = vmul.f32 %v2163, 1.442695
        %v2182 = vpow.pop %v2181
        %v2183 = vmul.f32 %v2164, 1.442695
        %v2184 = vpow.pop %v2183
        %v2185 = vmul.f32 %v2165, 1.442695
        %v2186 = vpow.pop %v2185
        %v2187 = vmul.f32 %v2166, 1.442695
        %v2188 = vpow.pop %v2187
        %v2189 = vmul.f32 %v2167, 1.442695
        %v2190 = vpow.pop %v2189
        %v2191 = vmul.f32 %v2168, 1.442695
        %v2192 = vpow.pop %v2191
        %v2193 = vmul.f32 %v2169, 1.442695
        %v2194 = vpow.pop %v2193
        %v2195 = vmul.f32 %v2170, 1.442695
        %v2196 = vpow.pop %v2195
        %v2197 = vmul.f32 %v2171, 1.442695
        %v2198 = vpow.pop %v2197
        %v2199 = vmul.f32 %v2172, 1.442695
        %v2200 = vpow.pop %v2199
        %v2201 = vmul.f32 %v2173, 1.442695
        %v2202 = vpow.pop %v2201
        %v2203 = vmul.f32 %v2174, 1.442695
        %v2204 = vpow.pop %v2203
        %v2205 = vmul.f32 %v2175, 1.442695
        %v2206 = vpow.pop %v2205
        %v2207 = vmul.f32 %v2176, 1.442695
        %v2208 = vpow.pop %v2207
        %v2209 = vadd.f32 %v2178, 1.0
        %v2210 = vadd.f32 %v2180, 1.0
        %v2211 = vadd.f32 %v2182, 1.0
        %v2212 = vadd.f32 %v2184, 1.0
        %v2213 = vadd.f32 %v2186, 1.0
        %v2214 = vadd.f32 %v2188, 1.0
        %v2215 = vadd.f32 %v2190, 1.0
        %v2216 = vadd.f32 %v2192, 1.0
        %v2217 = vadd.f32 %v2194, 1.0
        %v2218 = vadd.f32 %v2196, 1.0
        %v2219 = vadd.f32 %v2198, 1.0
        %v2220 = vadd.f32 %v2200, 1.0
        %v2221 = vadd.f32 %v2202, 1.0
        %v2222 = vadd.f32 %v2204, 1.0
        %v2223 = vadd.f32 %v2206, 1.0
        %v2224 = vadd.f32 %v2208, 1.0
        %v2225 = vrcp.pop %v2209
        %v2226 = vmul.f32 %v2209, %v2225
        %v2227 = vsub.f32 1.0, %v2226
        %v2228 = vmul.f32 %v2225, %v2227
        %v2229 = vadd.f32 %v2225, %v2228
        %vm2230 = vweird.f32 %v2209
        %vm2231 = vweird.f32 %v2225
        %vm2232 = vmor %vm2230, %vm2231
        %v2233 = vsel %vm2232, %v2225, %v2229
        %v2234 = vand.u32 2147483647, %v2209
        %vm2235 = vcmp.eq.f32.partialorder %v2234, 8.507059e+37
        %v2236 = vand.u32 %v2209, 2147483648
        %v2237 = vor.u32 1.1754944e-38, %v2236
        %v2238 = vsel %vm2235, %v2237, %v2233
        %v2239 = vmul.f32 1.0, %v2238
        %v2240 = vrcp.pop %v2210
        %v2241 = vmul.f32 %v2210, %v2240
        %v2242 = vsub.f32 1.0, %v2241
        %v2243 = vmul.f32 %v2240, %v2242
        %v2244 = vadd.f32 %v2240, %v2243
        %vm2245 = vweird.f32 %v2210
        %vm2246 = vweird.f32 %v2240
        %vm2247 = vmor %vm2245, %vm2246
        %v2248 = vsel %vm2247, %v2240, %v2244
        %v2249 = vand.u32 2147483647, %v2210
        %vm2250 = vcmp.eq.f32.partialorder %v2249, 8.507059e+37
        %v2251 = vand.u32 %v2210, 2147483648
        %v2252 = vor.u32 1.1754944e-38, %v2251
        %v2253 = vsel %vm2250, %v2252, %v2248
        %v2254 = vmul.f32 1.0, %v2253
        %v2255 = vrcp.pop %v2211
        %v2256 = vmul.f32 %v2211, %v2255
        %v2257 = vsub.f32 1.0, %v2256
        %v2258 = vmul.f32 %v2255, %v2257
        %v2259 = vadd.f32 %v2255, %v2258
        %vm2260 = vweird.f32 %v2211
        %vm2261 = vweird.f32 %v2255
        %vm2262 = vmor %vm2260, %vm2261
        %v2263 = vsel %vm2262, %v2255, %v2259
        %v2264 = vand.u32 2147483647, %v2211
        %vm2265 = vcmp.eq.f32.partialorder %v2264, 8.507059e+37
        %v2266 = vand.u32 %v2211, 2147483648
        %v2267 = vor.u32 1.1754944e-38, %v2266
        %v2268 = vsel %vm2265, %v2267, %v2263
        %v2269 = vmul.f32 1.0, %v2268
        %v2270 = vrcp.pop %v2212
        %v2271 = vmul.f32 %v2212, %v2270
        %v2272 = vsub.f32 1.0, %v2271
        %v2273 = vmul.f32 %v2270, %v2272
        %v2274 = vadd.f32 %v2270, %v2273
        %vm2275 = vweird.f32 %v2212
        %vm2276 = vweird.f32 %v2270
        %vm2277 = vmor %vm2275, %vm2276
        %v2278 = vsel %vm2277, %v2270, %v2274
        %v2279 = vand.u32 2147483647, %v2212
        %vm2280 = vcmp.eq.f32.partialorder %v2279, 8.507059e+37
        %v2281 = vand.u32 %v2212, 2147483648
        %v2282 = vor.u32 1.1754944e-38, %v2281
        %v2283 = vsel %vm2280, %v2282, %v2278
        %v2284 = vmul.f32 1.0, %v2283
        %v2285 = vrcp.pop %v2213
        %v2286 = vmul.f32 %v2213, %v2285
        %v2287 = vsub.f32 1.0, %v2286
        %v2288 = vmul.f32 %v2285, %v2287
        %v2289 = vadd.f32 %v2285, %v2288
        %vm2290 = vweird.f32 %v2213
        %vm2291 = vweird.f32 %v2285
        %vm2292 = vmor %vm2290, %vm2291
        %v2293 = vsel %vm2292, %v2285, %v2289
        %v2294 = vand.u32 2147483647, %v2213
        %vm2295 = vcmp.eq.f32.partialorder %v2294, 8.507059e+37
        %v2296 = vand.u32 %v2213, 2147483648
        %v2297 = vor.u32 1.1754944e-38, %v2296
        %v2298 = vsel %vm2295, %v2297, %v2293
        %v2299 = vmul.f32 1.0, %v2298
        %v2300 = vrcp.pop %v2214
        %v2301 = vmul.f32 %v2214, %v2300
        %v2302 = vsub.f32 1.0, %v2301
        %v2303 = vmul.f32 %v2300, %v2302
        %v2304 = vadd.f32 %v2300, %v2303
        %vm2305 = vweird.f32 %v2214
        %vm2306 = vweird.f32 %v2300
        %vm2307 = vmor %vm2305, %vm2306
        %v2308 = vsel %vm2307, %v2300, %v2304
        %v2309 = vand.u32 2147483647, %v2214
        %vm2310 = vcmp.eq.f32.partialorder %v2309, 8.507059e+37
        %v2311 = vand.u32 %v2214, 2147483648
        %v2312 = vor.u32 1.1754944e-38, %v2311
        %v2313 = vsel %vm2310, %v2312, %v2308
        %v2314 = vmul.f32 1.0, %v2313
        %v2315 = vrcp.pop %v2215
        %v2316 = vmul.f32 %v2215, %v2315
        %v2317 = vsub.f32 1.0, %v2316
        %v2318 = vmul.f32 %v2315, %v2317
        %v2319 = vadd.f32 %v2315, %v2318
        %vm2320 = vweird.f32 %v2215
        %vm2321 = vweird.f32 %v2315
        %vm2322 = vmor %vm2320, %vm2321
        %v2323 = vsel %vm2322, %v2315, %v2319
        %v2324 = vand.u32 2147483647, %v2215
        %vm2325 = vcmp.eq.f32.partialorder %v2324, 8.507059e+37
        %v2326 = vand.u32 %v2215, 2147483648
        %v2327 = vor.u32 1.1754944e-38, %v2326
        %v2328 = vsel %vm2325, %v2327, %v2323
        %v2329 = vmul.f32 1.0, %v2328
        %v2330 = vrcp.pop %v2216
        %v2331 = vmul.f32 %v2216, %v2330
        %v2332 = vsub.f32 1.0, %v2331
        %v2333 = vmul.f32 %v2330, %v2332
        %v2334 = vadd.f32 %v2330, %v2333
        %vm2335 = vweird.f32 %v2216
        %vm2336 = vweird.f32 %v2330
        %vm2337 = vmor %vm2335, %vm2336
        %v2338 = vsel %vm2337, %v2330, %v2334
        %v2339 = vand.u32 2147483647, %v2216
        %vm2340 = vcmp.eq.f32.partialorder %v2339, 8.507059e+37
        %v2341 = vand.u32 %v2216, 2147483648
        %v2342 = vor.u32 1.1754944e-38, %v2341
        %v2343 = vsel %vm2340, %v2342, %v2338
        %v2344 = vmul.f32 1.0, %v2343
        %v2345 = vrcp.pop %v2217
        %v2346 = vmul.f32 %v2217, %v2345
        %v2347 = vsub.f32 1.0, %v2346
        %v2348 = vmul.f32 %v2345, %v2347
        %v2349 = vadd.f32 %v2345, %v2348
        %vm2350 = vweird.f32 %v2217
        %vm2351 = vweird.f32 %v2345
        %vm2352 = vmor %vm2350, %vm2351
        %v2353 = vsel %vm2352, %v2345, %v2349
        %v2354 = vand.u32 2147483647, %v2217
        %vm2355 = vcmp.eq.f32.partialorder %v2354, 8.507059e+37
        %v2356 = vand.u32 %v2217, 2147483648
        %v2357 = vor.u32 1.1754944e-38, %v2356
        %v2358 = vsel %vm2355, %v2357, %v2353
        %v2359 = vmul.f32 1.0, %v2358
        %v2360 = vrcp.pop %v2218
        %v2361 = vmul.f32 %v2218, %v2360
        %v2362 = vsub.f32 1.0, %v2361
        %v2363 = vmul.f32 %v2360, %v2362
        %v2364 = vadd.f32 %v2360, %v2363
        %vm2365 = vweird.f32 %v2218
        %vm2366 = vweird.f32 %v2360
        %vm2367 = vmor %vm2365, %vm2366
        %v2368 = vsel %vm2367, %v2360, %v2364
        %v2369 = vand.u32 2147483647, %v2218
        %vm2370 = vcmp.eq.f32.partialorder %v2369, 8.507059e+37
        %v2371 = vand.u32 %v2218, 2147483648
        %v2372 = vor.u32 1.1754944e-38, %v2371
        %v2373 = vsel %vm2370, %v2372, %v2368
        %v2374 = vmul.f32 1.0, %v2373
        %v2375 = vrcp.pop %v2219
        %v2376 = vmul.f32 %v2219, %v2375
        %v2377 = vsub.f32 1.0, %v2376
        %v2378 = vmul.f32 %v2375, %v2377
        %v2379 = vadd.f32 %v2375, %v2378
        %vm2380 = vweird.f32 %v2219
        %vm2381 = vweird.f32 %v2375
        %vm2382 = vmor %vm2380, %vm2381
        %v2383 = vsel %vm2382, %v2375, %v2379
        %v2384 = vand.u32 2147483647, %v2219
        %vm2385 = vcmp.eq.f32.partialorder %v2384, 8.507059e+37
        %v2386 = vand.u32 %v2219, 2147483648
        %v2387 = vor.u32 1.1754944e-38, %v2386
        %v2388 = vsel %vm2385, %v2387, %v2383
        %v2389 = vmul.f32 1.0, %v2388
        %v2390 = vrcp.pop %v2220
        %v2391 = vmul.f32 %v2220, %v2390
        %v2392 = vsub.f32 1.0, %v2391
        %v2393 = vmul.f32 %v2390, %v2392
        %v2394 = vadd.f32 %v2390, %v2393
        %vm2395 = vweird.f32 %v2220
        %vm2396 = vweird.f32 %v2390
        %vm2397 = vmor %vm2395, %vm2396
        %v2398 = vsel %vm2397, %v2390, %v2394
        %v2399 = vand.u32 2147483647, %v2220
        %vm2400 = vcmp.eq.f32.partialorder %v2399, 8.507059e+37
        %v2401 = vand.u32 %v2220, 2147483648
        %v2402 = vor.u32 1.1754944e-38, %v2401
        %v2403 = vsel %vm2400, %v2402, %v2398
        %v2404 = vmul.f32 1.0, %v2403
        %v2405 = vrcp.pop %v2221
        %v2406 = vmul.f32 %v2221, %v2405
        %v2407 = vsub.f32 1.0, %v2406
        %v2408 = vmul.f32 %v2405, %v2407
        %v2409 = vadd.f32 %v2405, %v2408
        %vm2410 = vweird.f32 %v2221
        %vm2411 = vweird.f32 %v2405
        %vm2412 = vmor %vm2410, %vm2411
        %v2413 = vsel %vm2412, %v2405, %v2409
        %v2414 = vand.u32 2147483647, %v2221
        %vm2415 = vcmp.eq.f32.partialorder %v2414, 8.507059e+37
        %v2416 = vand.u32 %v2221, 2147483648
        %v2417 = vor.u32 1.1754944e-38, %v2416
        %v2418 = vsel %vm2415, %v2417, %v2413
        %v2419 = vmul.f32 1.0, %v2418
        %v2420 = vrcp.pop %v2222
        %v2421 = vmul.f32 %v2222, %v2420
        %v2422 = vsub.f32 1.0, %v2421
        %v2423 = vmul.f32 %v2420, %v2422
        %v2424 = vadd.f32 %v2420, %v2423
        %vm2425 = vweird.f32 %v2222
        %vm2426 = vweird.f32 %v2420
        %vm2427 = vmor %vm2425, %vm2426
        %v2428 = vsel %vm2427, %v2420, %v2424
        %v2429 = vand.u32 2147483647, %v2222
        %vm2430 = vcmp.eq.f32.partialorder %v2429, 8.507059e+37
        %v2431 = vand.u32 %v2222, 2147483648
        %v2432 = vor.u32 1.1754944e-38, %v2431
        %v2433 = vsel %vm2430, %v2432, %v2428
        %v2434 = vmul.f32 1.0, %v2433
        %v2435 = vrcp.pop %v2223
        %v2436 = vmul.f32 %v2223, %v2435
        %v2437 = vsub.f32 1.0, %v2436
        %v2438 = vmul.f32 %v2435, %v2437
        %v2439 = vadd.f32 %v2435, %v2438
        %vm2440 = vweird.f32 %v2223
        %vm2441 = vweird.f32 %v2435
        %vm2442 = vmor %vm2440, %vm2441
        %v2443 = vsel %vm2442, %v2435, %v2439
        %v2444 = vand.u32 2147483647, %v2223
        %vm2445 = vcmp.eq.f32.partialorder %v2444, 8.507059e+37
        %v2446 = vand.u32 %v2223, 2147483648
        %v2447 = vor.u32 1.1754944e-38, %v2446
        %v2448 = vsel %vm2445, %v2447, %v2443
        %v2449 = vmul.f32 1.0, %v2448
        %v2450 = vrcp.pop %v2224
        %v2451 = vmul.f32 %v2224, %v2450
        %v2452 = vsub.f32 1.0, %v2451
        %v2453 = vmul.f32 %v2450, %v2452
        %v2454 = vadd.f32 %v2450, %v2453
        %vm2455 = vweird.f32 %v2224
        %vm2456 = vweird.f32 %v2450
        %vm2457 = vmor %vm2455, %vm2456
        %v2458 = vsel %vm2457, %v2450, %v2454
        %v2459 = vand.u32 2147483647, %v2224
        %vm2460 = vcmp.eq.f32.partialorder %v2459, 8.507059e+37
        %v2461 = vand.u32 %v2224, 2147483648
        %v2462 = vor.u32 1.1754944e-38, %v2461
        %v2463 = vsel %vm2460, %v2462, %v2458
        %v2464 = vmul.f32 1.0, %v2463
        %v2465 = vtanh.pop %v2122
        %v2466 = vtanh.pop %v2124
        %v2467 = vtanh.pop %v2127
        %v2468 = vtanh.pop %v2129
        %v2469 = vtanh.pop %v2132
        %v2470 = vtanh.pop %v2134
        %v2471 = vtanh.pop %v2137
        %v2472 = vtanh.pop %v2139
        %v2473 = vtanh.pop %v2142
        %v2474 = vtanh.pop %v2144
        %v2475 = vtanh.pop %v2147
        %v2476 = vtanh.pop %v2149
        %v2477 = vtanh.pop %v2152
        %v2478 = vtanh.pop %v2154
        %v2479 = vtanh.pop %v2157
        %v2480 = vtanh.pop %v2159
        %2481 = vrot.lane.b32.xlu0 %v1689, 112
        %v2482 = vpop.permute.xlu0 %2481
        %2483 = vrot.lane.b32.xlu0 %v1691, 112
        %v2484 = vpop.permute.xlu0 %2483
        %2485 = vrot.lane.b32.xlu0 %v1693, 112
        %v2486 = vpop.permute.xlu0 %2485
        %2487 = vrot.lane.b32.xlu0 %v1695, 112
        %v2488 = vpop.permute.xlu0 %2487
        %2489 = vrot.lane.b32.xlu0 %v1697, 112
        %v2490 = vpop.permute.xlu0 %2489
        %2491 = vrot.lane.b32.xlu0 %v1699, 112
        %v2492 = vpop.permute.xlu0 %2491
        %2493 = vrot.lane.b32.xlu0 %v1701, 112
        %v2494 = vpop.permute.xlu0 %2493
        %2495 = vrot.lane.b32.xlu0 %v1703, 112
        %v2496 = vpop.permute.xlu0 %2495
        %2497 = vrot.lane.b32.xlu0 %v1705, 112
        %v2498 = vpop.permute.xlu0 %2497
        %2499 = vrot.lane.b32.xlu0 %v1707, 112
        %v2500 = vpop.permute.xlu0 %2499
        %2501 = vrot.lane.b32.xlu0 %v1709, 112
        %v2502 = vpop.permute.xlu0 %2501
        %2503 = vrot.lane.b32.xlu0 %v1711, 112
        %v2504 = vpop.permute.xlu0 %2503
        %2505 = vrot.lane.b32.xlu0 %v1713, 112
        %v2506 = vpop.permute.xlu0 %2505
        %2507 = vrot.lane.b32.xlu0 %v1715, 112
        %v2508 = vpop.permute.xlu0 %2507
        %2509 = vrot.lane.b32.xlu0 %v1717, 112
        %v2510 = vpop.permute.xlu0 %2509
        %2511 = vrot.lane.b32.xlu0 %v1719, 112
        %v2512 = vpop.permute.xlu0 %2511
        %v2513 = vrot.slane %v2482, 4
        %v2514 = vrot.slane %v2484, 4
        %v2515 = vrot.slane %v2486, 4
        %v2516 = vrot.slane %v2488, 4
        %v2517 = vrot.slane %v2490, 4
        %v2518 = vrot.slane %v2492, 4
        %v2519 = vrot.slane %v2494, 4
        %v2520 = vrot.slane %v2496, 4
        %v2521 = vrot.slane %v2498, 4
        %v2522 = vrot.slane %v2500, 4
        %v2523 = vrot.slane %v2502, 4
        %v2524 = vrot.slane %v2504, 4
        %v2525 = vrot.slane %v2506, 4
        %v2526 = vrot.slane %v2508, 4
        %v2527 = vrot.slane %v2510, 4
        %v2528 = vrot.slane %v2512, 4
        %v2545 = vunpack.c.l.bf16 %v2513
        %v2546 = vunpack.c.l.bf16 %v2514
        %v2547 = vunpack.c.l.bf16 %v2515
        %v2548 = vunpack.c.l.bf16 %v2516
        %v2549 = vunpack.c.l.bf16 %v2517
        %v2550 = vunpack.c.l.bf16 %v2518
        %v2551 = vunpack.c.l.bf16 %v2519
        %v2552 = vunpack.c.l.bf16 %v2520
        %v2553 = vunpack.c.l.bf16 %v2521
        %v2554 = vunpack.c.l.bf16 %v2522
        %v2555 = vunpack.c.l.bf16 %v2523
        %v2556 = vunpack.c.l.bf16 %v2524
        %v2557 = vunpack.c.l.bf16 %v2525
        %v2558 = vunpack.c.l.bf16 %v2526
        %v2559 = vunpack.c.l.bf16 %v2527
        %v2560 = vunpack.c.l.bf16 %v2528
        %v2561 = vmul.f32 %v2239, %v2545
        %v2562 = vmul.f32 %v2254, %v2546
        %v2563 = vmul.f32 %v2269, %v2547
        %v2564 = vmul.f32 %v2284, %v2548
        %v2565 = vmul.f32 %v2299, %v2549
        %v2566 = vmul.f32 %v2314, %v2550
        %v2567 = vmul.f32 %v2329, %v2551
        %v2568 = vmul.f32 %v2344, %v2552
        %v2569 = vmul.f32 %v2359, %v2553
        %v2570 = vmul.f32 %v2374, %v2554
        %v2571 = vmul.f32 %v2389, %v2555
        %v2572 = vmul.f32 %v2404, %v2556
        %v2573 = vmul.f32 %v2419, %v2557
        %v2574 = vmul.f32 %v2434, %v2558
        %v2575 = vmul.f32 %v2449, %v2559
        %v2576 = vmul.f32 %v2464, %v2560
        %v2577 = vsub.f32 1.0, %v2239
        %v2578 = vsub.f32 1.0, %v2254
        %v2579 = vsub.f32 1.0, %v2269
        %v2580 = vsub.f32 1.0, %v2284
        %v2581 = vsub.f32 1.0, %v2299
        %v2582 = vsub.f32 1.0, %v2314
        %v2583 = vsub.f32 1.0, %v2329
        %v2584 = vsub.f32 1.0, %v2344
        %v2585 = vsub.f32 1.0, %v2359
        %v2586 = vsub.f32 1.0, %v2374
        %v2587 = vsub.f32 1.0, %v2389
        %v2588 = vsub.f32 1.0, %v2404
        %v2589 = vsub.f32 1.0, %v2419
        %v2590 = vsub.f32 1.0, %v2434
        %v2591 = vsub.f32 1.0, %v2449
        %v2592 = vsub.f32 1.0, %v2464
        %2609 = vrot.lane.b32.xlu0 %v2577, 112
        %v2610 = vpop.permute.xlu0 %2609
        %2611 = vrot.lane.b32.xlu0 %v2578, 112
        %v2612 = vpop.permute.xlu0 %2611
        %2613 = vrot.lane.b32.xlu0 %v2579, 112
        %v2614 = vpop.permute.xlu0 %2613
        %2615 = vrot.lane.b32.xlu0 %v2580, 112
        %v2616 = vpop.permute.xlu0 %2615
        %2617 = vrot.lane.b32.xlu0 %v2581, 112
        %v2618 = vpop.permute.xlu0 %2617
        %2619 = vrot.lane.b32.xlu0 %v2582, 112
        %v2620 = vpop.permute.xlu0 %2619
        %2621 = vrot.lane.b32.xlu0 %v2583, 112
        %v2622 = vpop.permute.xlu0 %2621
        %2623 = vrot.lane.b32.xlu0 %v2584, 112
        %v2624 = vpop.permute.xlu0 %2623
        %2625 = vrot.lane.b32.xlu0 %v2585, 112
        %v2626 = vpop.permute.xlu0 %2625
        %2627 = vrot.lane.b32.xlu0 %v2586, 112
        %v2628 = vpop.permute.xlu0 %2627
        %2629 = vrot.lane.b32.xlu0 %v2587, 112
        %v2630 = vpop.permute.xlu0 %2629
        %2631 = vrot.lane.b32.xlu0 %v2588, 112
        %v2632 = vpop.permute.xlu0 %2631
        %2633 = vrot.lane.b32.xlu0 %v2589, 112
        %v2634 = vpop.permute.xlu0 %2633
        %2635 = vrot.lane.b32.xlu0 %v2590, 112
        %v2636 = vpop.permute.xlu0 %2635
        %2637 = vrot.lane.b32.xlu0 %v2591, 112
        %v2638 = vpop.permute.xlu0 %2637
        %2639 = vrot.lane.b32.xlu0 %v2592, 112
        %v2640 = vpop.permute.xlu0 %2639
        %v2657 = vmul.f32 %v2561, %v2610
        %v2658 = vmul.f32 %v2562, %v2612
        %v2659 = vmul.f32 %v2563, %v2614
        %v2660 = vmul.f32 %v2564, %v2616
        %v2661 = vmul.f32 %v2565, %v2618
        %v2662 = vmul.f32 %v2566, %v2620
        %v2663 = vmul.f32 %v2567, %v2622
        %v2664 = vmul.f32 %v2568, %v2624
        %v2665 = vmul.f32 %v2569, %v2626
        %v2666 = vmul.f32 %v2570, %v2628
        %v2667 = vmul.f32 %v2571, %v2630
        %v2668 = vmul.f32 %v2572, %v2632
        %v2669 = vmul.f32 %v2573, %v2634
        %v2670 = vmul.f32 %v2574, %v2636
        %v2671 = vmul.f32 %v2575, %v2638
        %v2672 = vmul.f32 %v2576, %v2640
        %2689 = vrot.lane.b32.xlu0 %v2465, 112
        %v2690 = vpop.permute.xlu0 %2689
        %2691 = vrot.lane.b32.xlu0 %v2466, 112
        %v2692 = vpop.permute.xlu0 %2691
        %2693 = vrot.lane.b32.xlu0 %v2467, 112
        %v2694 = vpop.permute.xlu0 %2693
        %2695 = vrot.lane.b32.xlu0 %v2468, 112
        %v2696 = vpop.permute.xlu0 %2695
        %2697 = vrot.lane.b32.xlu0 %v2469, 112
        %v2698 = vpop.permute.xlu0 %2697
        %2699 = vrot.lane.b32.xlu0 %v2470, 112
        %v2700 = vpop.permute.xlu0 %2699
        %2701 = vrot.lane.b32.xlu0 %v2471, 112
        %v2702 = vpop.permute.xlu0 %2701
        %2703 = vrot.lane.b32.xlu0 %v2472, 112
        %v2704 = vpop.permute.xlu0 %2703
        %2705 = vrot.lane.b32.xlu0 %v2473, 112
        %v2706 = vpop.permute.xlu0 %2705
        %2707 = vrot.lane.b32.xlu0 %v2474, 112
        %v2708 = vpop.permute.xlu0 %2707
        %2709 = vrot.lane.b32.xlu0 %v2475, 112
        %v2710 = vpop.permute.xlu0 %2709
        %2711 = vrot.lane.b32.xlu0 %v2476, 112
        %v2712 = vpop.permute.xlu0 %2711
        %2713 = vrot.lane.b32.xlu0 %v2477, 112
        %v2714 = vpop.permute.xlu0 %2713
        %2715 = vrot.lane.b32.xlu0 %v2478, 112
        %v2716 = vpop.permute.xlu0 %2715
        %2717 = vrot.lane.b32.xlu0 %v2479, 112
        %v2718 = vpop.permute.xlu0 %2717
        %2719 = vrot.lane.b32.xlu0 %v2480, 112
        %v2720 = vpop.permute.xlu0 %2719
        %v2737 = vmul.f32 %v2239, %v2690
        %v2738 = vmul.f32 %v2254, %v2692
        %v2739 = vmul.f32 %v2269, %v2694
        %v2740 = vmul.f32 %v2284, %v2696
        %v2741 = vmul.f32 %v2299, %v2698
        %v2742 = vmul.f32 %v2314, %v2700
        %v2743 = vmul.f32 %v2329, %v2702
        %v2744 = vmul.f32 %v2344, %v2704
        %v2745 = vmul.f32 %v2359, %v2706
        %v2746 = vmul.f32 %v2374, %v2708
        %v2747 = vmul.f32 %v2389, %v2710
        %v2748 = vmul.f32 %v2404, %v2712
        %v2749 = vmul.f32 %v2419, %v2714
        %v2750 = vmul.f32 %v2434, %v2716
        %v2751 = vmul.f32 %v2449, %v2718
        %v2752 = vmul.f32 %v2464, %v2720
        %2769 = vrot.lane.b32.xlu0 %v2737, 112
        %v2770 = vpop.permute.xlu0 %2769
        %2771 = vrot.lane.b32.xlu0 %v2738, 112
        %v2772 = vpop.permute.xlu0 %2771
        %2773 = vrot.lane.b32.xlu0 %v2739, 112
        %v2774 = vpop.permute.xlu0 %2773
        %2775 = vrot.lane.b32.xlu0 %v2740, 112
        %v2776 = vpop.permute.xlu0 %2775
        %2777 = vrot.lane.b32.xlu0 %v2741, 112
        %v2778 = vpop.permute.xlu0 %2777
        %2779 = vrot.lane.b32.xlu0 %v2742, 112
        %v2780 = vpop.permute.xlu0 %2779
        %2781 = vrot.lane.b32.xlu0 %v2743, 112
        %v2782 = vpop.permute.xlu0 %2781
        %2783 = vrot.lane.b32.xlu0 %v2744, 112
        %v2784 = vpop.permute.xlu0 %2783
        %2785 = vrot.lane.b32.xlu0 %v2745, 112
        %v2786 = vpop.permute.xlu0 %2785
        %2787 = vrot.lane.b32.xlu0 %v2746, 112
        %v2788 = vpop.permute.xlu0 %2787
        %2789 = vrot.lane.b32.xlu0 %v2747, 112
        %v2790 = vpop.permute.xlu0 %2789
        %2791 = vrot.lane.b32.xlu0 %v2748, 112
        %v2792 = vpop.permute.xlu0 %2791
        %2793 = vrot.lane.b32.xlu0 %v2749, 112
        %v2794 = vpop.permute.xlu0 %2793
        %2795 = vrot.lane.b32.xlu0 %v2750, 112
        %v2796 = vpop.permute.xlu0 %2795
        %2797 = vrot.lane.b32.xlu0 %v2751, 112
        %v2798 = vpop.permute.xlu0 %2797
        %2799 = vrot.lane.b32.xlu0 %v2752, 112
        %v2800 = vpop.permute.xlu0 %2799
        %v2817 = vadd.f32 %v2657, %v2770
        %v2818 = vadd.f32 %v2658, %v2772
        %v2819 = vadd.f32 %v2659, %v2774
        %v2820 = vadd.f32 %v2660, %v2776
        %v2821 = vadd.f32 %v2661, %v2778
        %v2822 = vadd.f32 %v2662, %v2780
        %v2823 = vadd.f32 %v2663, %v2782
        %v2824 = vadd.f32 %v2664, %v2784
        %v2825 = vadd.f32 %v2665, %v2786
        %v2826 = vadd.f32 %v2666, %v2788
        %v2827 = vadd.f32 %v2667, %v2790
        %v2828 = vadd.f32 %v2668, %v2792
        %v2829 = vadd.f32 %v2669, %v2794
        %v2830 = vadd.f32 %v2670, %v2796
        %v2831 = vadd.f32 %v2671, %v2798
        %v2832 = vadd.f32 %v2672, %v2800
        %2833 = vxpose.xlu0.b32.start [1/16] %v2817, 128
        %2834 = vxpose.xlu0.b32.cont [2/16] %v2818, 128
        %2835 = vxpose.xlu0.b32.cont [3/16] %v2819, 128
        %2836 = vxpose.xlu0.b32.cont [4/16] %v2820, 128
        %2837 = vxpose.xlu0.b32.cont [5/16] %v2821, 128
        %2838 = vxpose.xlu0.b32.cont [6/16] %v2822, 128
        %2839 = vxpose.xlu0.b32.cont [7/16] %v2823, 128
        %2840 = vxpose.xlu0.b32.cont [8/16] %v2824, 128
        %2841 = vxpose.xlu0.b32.cont [9/16] 0.0, 128
        %2842 = vxpose.xlu0.b32.cont [10/16] 0.0, 128
        %2843 = vxpose.xlu0.b32.cont [11/16] 0.0, 128
        %2844 = vxpose.xlu0.b32.cont [12/16] 0.0, 128
        %2845 = vxpose.xlu0.b32.cont [13/16] 0.0, 128
        %2846 = vxpose.xlu0.b32.cont [14/16] 0.0, 128
        %2847 = vxpose.xlu0.b32.cont [15/16] 0.0, 128
        %2848 = vxpose.xlu0.b32.end [16/16] 0.0, 128
        %v2849 = vpop.trf.xlu0
        %v2850 = vpop.trf.xlu0
        %v2851 = vpop.trf.xlu0
        %v2852 = vpop.trf.xlu0
        %v2853 = vpop.trf.xlu0
        %v2854 = vpop.trf.xlu0
        %v2855 = vpop.trf.xlu0
        %v2856 = vpop.trf.xlu0
        %v2857 = vpop.trf.xlu0
        %v2858 = vpop.trf.xlu0
        %v2859 = vpop.trf.xlu0
        %v2860 = vpop.trf.xlu0
        %v2861 = vpop.trf.xlu0
        %v2862 = vpop.trf.xlu0
        %v2863 = vpop.trf.xlu0
        %v2864 = vpop.trf.xlu0
        %2865 = vxpose.xlu0.b32.start [1/16] %v2825, 128
        %2866 = vxpose.xlu0.b32.cont [2/16] %v2826, 128
        %2867 = vxpose.xlu0.b32.cont [3/16] %v2827, 128
        %2868 = vxpose.xlu0.b32.cont [4/16] %v2828, 128
        %2869 = vxpose.xlu0.b32.cont [5/16] %v2829, 128
        %2870 = vxpose.xlu0.b32.cont [6/16] %v2830, 128
        %2871 = vxpose.xlu0.b32.cont [7/16] %v2831, 128
        %2872 = vxpose.xlu0.b32.cont [8/16] %v2832, 128
        %2873 = vxpose.xlu0.b32.cont [9/16] 0.0, 128
        %2874 = vxpose.xlu0.b32.cont [10/16] 0.0, 128
        %2875 = vxpose.xlu0.b32.cont [11/16] 0.0, 128
        %2876 = vxpose.xlu0.b32.cont [12/16] 0.0, 128
        %2877 = vxpose.xlu0.b32.cont [13/16] 0.0, 128
        %2878 = vxpose.xlu0.b32.cont [14/16] 0.0, 128
        %2879 = vxpose.xlu0.b32.cont [15/16] 0.0, 128
        %2880 = vxpose.xlu0.b32.end [16/16] 0.0, 128
        %v2881 = vpop.trf.xlu0
        %v2882 = vpop.trf.xlu0
        %v2883 = vpop.trf.xlu0
        %v2884 = vpop.trf.xlu0
        %v2885 = vpop.trf.xlu0
        %v2886 = vpop.trf.xlu0
        %v2887 = vpop.trf.xlu0
        %v2888 = vpop.trf.xlu0
        %v2889 = vpop.trf.xlu0
        %v2890 = vpop.trf.xlu0
        %v2891 = vpop.trf.xlu0
        %v2892 = vpop.trf.xlu0
        %v2893 = vpop.trf.xlu0
        %v2894 = vpop.trf.xlu0
        %v2895 = vpop.trf.xlu0
        %v2896 = vpop.trf.xlu0
        %vm2897 = vcmask 523264
        %2898 = vst.msk [vmem:[%s166] sm:$0xff] %vm2897, %v2849
        %2899 = vst.msk [vmem:[%s166 + $0x8] sm:$0xff] %vm2897, %v2850
        %2900 = vst.msk [vmem:[%s166 + $0x10] sm:$0xff] %vm2897, %v2881
        %2901 = vst.msk [vmem:[%s166 + $0x18] sm:$0xff] %vm2897, %v2882
        %s2902 = sand.u32 %s93, 1
        %s2903 = scalar_lea.sflag [#allocation4], %s2902
        %s2904 = sand.u32 %s93, 1
        %s2905 = smul.addr %s2904, 32
        %s2906 = scalar_lea.vmem [#allocation3], %s2905
        // Predicated region
        $region33: #{tpu_custom_call.1} parent=31 // pred_check
          %p2907 = pneg %p103
        $region34: #{tpu_custom_call.1} parent=31 // pred_check_branch
          %2909 = sbr.rel (%p2907) target = $region36
        $region35: #{tpu_custom_call.1} parent=31 // pred_region
          %s2910 = smul.u32 2, %s17
          %2912 = vsyncadd %s2903, 0
          %s2913 = smul.addr %s2910, 2
          %s2914 = smul.addr %s2913, 8
          %s2915 = scalar_lea.hbm %s3, %s2914
          %s2916 = sshll.u32 %s2906, 4
          %s2917 = int_to_ptr.vmem [resolvable:$true] %s2916
          %s2918 = sshll.u32 %s2915, 4
          %s2919 = int_to_ptr.hbm [resolvable:$true] %s2918
          %2924 = dma.vmem_to_hbm [thread:$0]  %s2917, 512, %s2919, %s2903, 128, 128, 8
        $region36: #{tpu_custom_call.1} parent=31 // pred_fallthru
          _
      $region32: #{tpu_custom_call.1} parent=5 // pred_fallthru
        _
      %p2925 = scmp.le.s32.totalorder 2, %s12
      // Predicated region
      $region37: #{tpu_custom_call.1} parent=5 // pred_check
        %p2926 = pneg %p2925
      $region38: #{tpu_custom_call.1} parent=5 // pred_check_branch
        %2928 = sbr.rel (%p2926) target = $region40
      $region39: #{tpu_custom_call.1} parent=5 // pred_region
        %s2929 = ssub.s32 %s12, 2
        // Predicated region
        $region41: #{tpu_custom_call.1} parent=39 // pred_check
          %p2930 = pneg %p109
        $region42: #{tpu_custom_call.1} parent=39 // pred_check_branch
          %2932 = sbr.rel (%p2930) target = $region44
        $region43: #{tpu_custom_call.1} parent=39 // pred_region
          %s2933 = sand.u32 %s94, 1
          %s2934 = scalar_lea.sflag [#allocation4], %s2933
          %s2935 = sand.u32 %s94, 1
          %s2936 = smul.addr %s2935, 32
          %s2937 = scalar_lea.vmem [#allocation3], %s2936
          %2939 = dma.done %s2934, 512
        $region44: #{tpu_custom_call.1} parent=39 // pred_fallthru
          _
      $region40: #{tpu_custom_call.1} parent=5 // pred_fallthru
        _
    $region6: #{tpu_custom_call.1} parent=1 // loop_footer
      %s16 = sadd.s32 1, %s12
    $region7: #{tpu_custom_call.1} parent=1 // loop_footer_branch
      %11 = sbr.rel target = $region3
    $region8: #{tpu_custom_call.1} parent=1 // loop_exit
      _
    %2940 = vsyncpa [#allocation4], 1
    %s2941 = scalar_lea.sflag [#allocation4], 1
    %2942 = vsyncpa %s2941, 1

</llo_original>
